<compile_context>
chip_gen: v7x
topology: tpu7x:2x2x1
jax: 0.10.0
libtpu: 0.0.40
codegen_flags: <defaults>
</compile_context>

<pallas_src>
import functools

import jax
import jax.numpy as jnp
import numpy as np
from jax.experimental import pallas as pl
from jax.experimental.pallas import tpu as pltpu

# ----------------------------- model sizes ---------------------------------
OBS_SIZE = 20
HIDDEN = 32
FC_DIMS = 64
N_ACTIONS = 4
BATCH = 2
SEQ = 8
DIN = OBS_SIZE + N_ACTIONS  # 24
PADDED_A = 128              # lane-dense output width


# ------------------------------ Pallas kernel ------------------------------
def dqn_lstm_kernel(
    x_ref,      # [T*B, Din] f32   time-major concatenated (obs, one-hot) input
    sel_ref,    # [T*B, 1]  f32    1.0 where t == seq_len-1 for that row, else 0
    w1_ref,     # [Din, FC] f32    input_net linear 1
    b1_ref,     # [1, FC]   f32
    w2g_ref,    # [FC, 4H]  f32    folded (input_net linear 2) @ (LSTM W_ih cat)
    b2g_ref,    # [1, 4H]   f32    folded bias: b2 @ W_ih_cat + (b_ih + b_hh)
    whhc_ref,   # [H, 4H]   f32    LSTM hidden->hidden, gates concatenated (i,f,o,g)
    w3_ref,     # [H, FC]   f32    output_net linear 1
    b3_ref,     # [1, FC]   f32
    w4_ref,     # [FC, 128] f32    output_net linear 2, zero-padded to 128 lanes
    b4_ref,     # [1, 128]  f32
    q_ref,      # [B, 128]  f32    padded output Q-values (first A lanes valid)
):
    TB = x_ref.shape[0]
    B = q_ref.shape[0]
    T = TB // B
    H = whhc_ref.shape[0]

    # ---- everything with no h/c dependence, hoisted before the recurrence ----
    x = x_ref[...]                                                    # [T*B, Din]
    z1 = jnp.maximum(
        jnp.dot(x, w1_ref[...], preferred_element_type=jnp.float32) + b1_ref[...],
        0.0)                                                          # [T*B, FC]
    # One [T*B, FC] @ [FC, 4H] matmul produces the input-side gate
    # pre-activations for ALL timesteps (16-row MXU occupancy).
    gate_x_all = (jnp.dot(z1, w2g_ref[...], preferred_element_type=jnp.float32)
                  + b2g_ref[...])                                     # [T*B, 4H]

    # ---- loop-invariant operands loaded exactly once --------------------------
    sel = sel_ref[...]        # [T*B, 1]
    whh = whhc_ref[...]       # [H, 4H]  lane-dense (128 lanes)

    h = jnp.zeros((B, H), jnp.float32)
    c = jnp.zeros((B, H), jnp.float32)
    fin = jnp.zeros((B, H), jnp.float32)

    # ---- LSTM recurrence, fully unrolled (T is static & tiny) -----------------
    # Gate order inside the 4H axis (set up by the wrapper): [i | f | o | g].
    for t in range(T):
        gx = gate_x_all[t * B:(t + 1) * B, :]      # [B, 4H]  static slice
        sel_t = sel[t * B:(t + 1) * B, :]          # [B, 1]

        # Single MXU push per step on the serial chain.
        pre = gx + jnp.dot(h, whh, preferred_element_type=jnp.float32)  # [B, 4H]

        sig = jax.nn.sigmoid(pre[:, 0:3 * H])      # one contiguous 3H-lane EUP pass
        i_g = sig[:, 0:H]
        f_g = sig[:, H:2 * H]
        o_g = sig[:, 2 * H:3 * H]
        g_g = jnp.tanh(pre[:, 3 * H:4 * H])        # tanh only on the g lanes

        c = f_g * c + i_g * g_g
        h = o_g * jnp.tanh(c)

        # Online "gather at seq_len - 1": exactly one t per row has sel==1.
        fin = fin + sel_t * h

    # ---- output_net MLP (lane-dense 128-wide store) ----------------------------
    z3 = jnp.maximum(
        jnp.dot(fin, w3_ref[...], preferred_element_type=jnp.float32) + b3_ref[...],
        0.0)
    q_ref[...] = (jnp.dot(z3, w4_ref[...], preferred_element_type=jnp.float32)
                  + b4_ref[...])


# ------------------------------- wrapper ------------------------------------
@functools.partial(jax.jit, static_argnames=("n_actions",))
def dqn_lstm_forward(observation, prev_action, sequence_lengths, params,
                     *, n_actions=N_ACTIONS):
    """observation: [B,T,obs] f32; prev_action: [B,T] i32; seq_lens: [B] i32."""
    one_hot = jax.nn.one_hot(prev_action, n_actions, dtype=observation.dtype)
    x = jnp.concatenate([observation, one_hot], axis=-1)      # [B, T, Din]
    B, T, Din = x.shape
    A = n_actions

    # Time-major 2-D slab [T*B, Din] (lane-friendly loads inside the kernel).
    x_tb = jnp.transpose(x, (1, 0, 2)).reshape(T * B, Din)

    # Selection mask: sel[t*B + b] = 1.0 iff sequence_lengths[b] == t + 1.
    t_idx = jnp.arange(1, T + 1, dtype=jnp.int32)[:, None]    # [T, 1]
    sel = (t_idx == sequence_lengths.astype(jnp.int32)[None, :]).astype(jnp.float32)
    sel = sel.reshape(T * B, 1)                                # [T*B, 1]

    w1, b1, w2, b2, wih, whh, bl, w3, b3, w4, b4 = params
    H = w2.shape[1]

    # Gate order [i | f | o | g] so sigmoid is one contiguous 3H slice and
    # tanh only the trailing H lanes inside the kernel.
    gate_order = (0, 1, 3, 2)                                  # params store (i,f,g,o)
    wih_cat = jnp.concatenate([wih[g] for g in gate_order], axis=1)   # [H, 4H]
    whh_cat = jnp.concatenate([whh[g] for g in gate_order], axis=1)   # [H, 4H]
    bl_cat = jnp.concatenate([bl[g] for g in gate_order], axis=1)     # [1, 4H]

    # Fold input_net linear-2 into the LSTM input-gate projection (trace-time,
    # pure linear-algebra fold): (z1@w2 + b2)@W_ih + bl == z1@(w2@W_ih) + (b2@W_ih + bl).
    w2g = w2 @ wih_cat                      # [FC, 4H]
    b2g = b2 @ wih_cat + bl_cat             # [1, 4H]

    # Lane-dense output: zero-pad the last linear to 128 output lanes.
    w4p = jnp.zeros((w4.shape[0], PADDED_A), jnp.float32).at[:, :A].set(w4)
    b4p = jnp.zeros((1, PADDED_A), jnp.float32).at[:, :A].set(b4)

    args = (x_tb, sel, w1, b1, w2g, b2g, whh_cat, w3, b3, w4p, b4p)
    vmem_spec = pl.BlockSpec(memory_space=pltpu.MemorySpace.VMEM)

    q_pad = pl.pallas_call(
        dqn_lstm_kernel,
        out_shape=jax.ShapeDtypeStruct((B, PADDED_A), jnp.float32),
        in_specs=[vmem_spec] * len(args),
        out_specs=vmem_spec,
    )(*args)
    return q_pad[:, :A]


# --------------------------- pure-JAX reference ------------------------------
def ref_forward(observation, prev_action, sequence_lengths, params):
    w1, b1, w2, b2, wih, whh, bl, w3, b3, w4, b4 = params
    oh = jax.nn.one_hot(prev_action, N_ACTIONS, dtype=jnp.float32)
    x = jnp.concatenate([observation, oh], axis=-1)
    z1 = jax.nn.relu(x @ w1 + b1)
    rnn_in = z1 @ w2 + b2  # [B, T, H]
    B, T, H = rnn_in.shape

    def step(carry, xt):
        h, c = carry

        def gate(g):
            return xt @ wih[g] + h @ whh[g] + bl[g]

        i = jax.nn.sigmoid(gate(0))
        f = jax.nn.sigmoid(gate(1))
        g_ = jnp.tanh(gate(2))
        o = jax.nn.sigmoid(gate(3))
        c = f * c + i * g_
        h = o * jnp.tanh(c)
        return (h, c), h

    (_, _), hs = jax.lax.scan(
        step,
        (jnp.zeros((B, H), jnp.float32), jnp.zeros((B, H), jnp.float32)),
        jnp.transpose(rnn_in, (1, 0, 2)))
    fin = hs[sequence_lengths - 1, jnp.arange(B)]  # [B, H]
    z3 = jax.nn.relu(fin @ w3 + b3)
    return z3 @ w4 + b4


# --------------------------------- main --------------------------------------
def make_params(key):
    keys = jax.random.split(key, 13)
    s = 0.1
    w1 = s * jax.random.normal(keys[0], (DIN, FC_DIMS), jnp.float32)
    b1 = s * jax.random.normal(keys[1], (1, FC_DIMS), jnp.float32)
    w2 = s * jax.random.normal(keys[2], (FC_DIMS, HIDDEN), jnp.float32)
    b2 = s * jax.random.normal(keys[3], (1, HIDDEN), jnp.float32)
    wih = s * jax.random.normal(keys[4], (4, HIDDEN, HIDDEN), jnp.float32)
    whh = s * jax.random.normal(keys[5], (4, HIDDEN, HIDDEN), jnp.float32)
    b_ih = s * jax.random.normal(keys[6], (4, 1, HIDDEN), jnp.float32)
    b_hh = s * jax.random.normal(keys[7], (4, 1, HIDDEN), jnp.float32)
    bl = b_ih + b_hh  # PyTorch LSTM adds b_ih + b_hh; fold into one bias
    w3 = s * jax.random.normal(keys[8], (HIDDEN, FC_DIMS), jnp.float32)
    b3 = s * jax.random.normal(keys[9], (1, FC_DIMS), jnp.float32)
    w4 = s * jax.random.normal(keys[10], (FC_DIMS, N_ACTIONS), jnp.float32)
    b4 = s * jax.random.normal(keys[11], (1, N_ACTIONS), jnp.float32)
    return (w1, b1, w2, b2, wih, whh, bl, w3, b3, w4, b4)


if __name__ == "__main__":
    key = jax.random.PRNGKey(0)
    k_obs, k_act, k_len, k_par = jax.random.split(key, 4)

    observation = jax.random.normal(k_obs, (BATCH, SEQ, OBS_SIZE), jnp.float32)
    prev_action = jax.random.randint(k_act, (BATCH, SEQ), 0, N_ACTIONS,
                                     dtype=jnp.int32)
    # NOTE: lengths drawn in [1, T]; length 0 is undefined for this module
    # (PyTorch's gather at index -1 vs. zeros here).
    sequence_lengths = jax.random.randint(k_len, (BATCH,), 1, SEQ + 1,
                                          dtype=jnp.int32)
    params = make_params(k_par)

    q = dqn_lstm_forward(observation, prev_action, sequence_lengths, params)
    q = jax.block_until_ready(q)

    q_ref = ref_forward(observation, prev_action, sequence_lengths, params)
    np.testing.assert_allclose(np.asarray(q), np.asarray(q_ref),
                               rtol=1e-4, atol=1e-4)

    print("KERNEL_OK")
</pallas_src>

<mosaic_0001>
module attributes {stable_mosaic.version = 11 : i64} {
  func.func @dqn_lstm_kernel(%arg0: memref<16x24xf32, #tpu.memory_space<vmem>>, %arg1: memref<16x1xf32, #tpu.memory_space<vmem>>, %arg2: memref<24x64xf32, #tpu.memory_space<vmem>>, %arg3: memref<1x64xf32, #tpu.memory_space<vmem>>, %arg4: memref<64x128xf32, #tpu.memory_space<vmem>>, %arg5: memref<1x128xf32, #tpu.memory_space<vmem>>, %arg6: memref<32x128xf32, #tpu.memory_space<vmem>>, %arg7: memref<32x64xf32, #tpu.memory_space<vmem>>, %arg8: memref<1x64xf32, #tpu.memory_space<vmem>>, %arg9: memref<64x128xf32, #tpu.memory_space<vmem>>, %arg10: memref<1x128xf32, #tpu.memory_space<vmem>>, %arg11: memref<2x128xf32, #tpu.memory_space<vmem>>) attributes {dimension_semantics = [], scalar_prefetch = 0 : i64, scratch_operands = 0 : i64, tpu.core_type = #tpu.core_type<tc>} {
    %c0 = arith.constant 0 : index
    %c0_0 = arith.constant 0 : index
    %0 = vector.load %arg0[%c0, %c0_0] : memref<16x24xf32, #tpu.memory_space<vmem>>, vector<16x24xf32>
    %c0_1 = arith.constant 0 : index
    %c0_2 = arith.constant 0 : index
    %1 = vector.load %arg2[%c0_1, %c0_2] : memref<24x64xf32, #tpu.memory_space<vmem>>, vector<24x64xf32>
    %cst = arith.constant dense<0.000000e+00> : vector<16x64xf32>
    %2 = tpu.matmul %0, %1, %cst {dimension_numbers = #tpu.dot_dimension_numbers<[1], [0], [0], [1], [0, 0, 1, 1], [], []>} : vector<16x24xf32>, vector<24x64xf32>, vector<16x64xf32> -> vector<16x64xf32>
    %c0_3 = arith.constant 0 : index
    %c0_4 = arith.constant 0 : index
    %3 = vector.load %arg3[%c0_3, %c0_4] : memref<1x64xf32, #tpu.memory_space<vmem>>, vector<1x64xf32>
    %4 = vector.broadcast %3 : vector<1x64xf32> to vector<16x64xf32>
    %5 = arith.addf %2, %4 : vector<16x64xf32>
    %cst_5 = arith.constant 0.000000e+00 : f32
    %6 = vector.broadcast %cst_5 : f32 to vector<16x64xf32>
    %7 = arith.maximumf %5, %6 : vector<16x64xf32>
    %c0_6 = arith.constant 0 : index
    %c0_7 = arith.constant 0 : index
    %8 = vector.load %arg4[%c0_6, %c0_7] : memref<64x128xf32, #tpu.memory_space<vmem>>, vector<64x128xf32>
    %cst_8 = arith.constant dense<0.000000e+00> : vector<16x128xf32>
    %9 = tpu.matmul %7, %8, %cst_8 {dimension_numbers = #tpu.dot_dimension_numbers<[1], [0], [0], [1], [0, 0, 1, 1], [], []>} : vector<16x64xf32>, vector<64x128xf32>, vector<16x128xf32> -> vector<16x128xf32>
    %c0_9 = arith.constant 0 : index
    %c0_10 = arith.constant 0 : index
    %10 = vector.load %arg5[%c0_9, %c0_10] : memref<1x128xf32, #tpu.memory_space<vmem>>, vector<1x128xf32>
    %11 = vector.broadcast %10 : vector<1x128xf32> to vector<16x128xf32>
    %12 = arith.addf %9, %11 : vector<16x128xf32>
    %c0_11 = arith.constant 0 : index
    %c0_12 = arith.constant 0 : index
    %13 = vector.load %arg1[%c0_11, %c0_12] : memref<16x1xf32, #tpu.memory_space<vmem>>, vector<16x1xf32>
    %c0_13 = arith.constant 0 : index
    %c0_14 = arith.constant 0 : index
    %14 = vector.load %arg6[%c0_13, %c0_14] : memref<32x128xf32, #tpu.memory_space<vmem>>, vector<32x128xf32>
    %cst_15 = arith.constant 0.000000e+00 : f32
    %15 = vector.broadcast %cst_15 : f32 to vector<2x32xf32>
    %cst_16 = arith.constant 0.000000e+00 : f32
    %16 = vector.broadcast %cst_16 : f32 to vector<2x32xf32>
    %cst_17 = arith.constant 0.000000e+00 : f32
    %17 = vector.broadcast %cst_17 : f32 to vector<2x32xf32>
    %18 = vector.extract_strided_slice %12 {offsets = [0, 0], sizes = [2, 128], strides = [1, 1]} : vector<16x128xf32> to vector<2x128xf32>
    %19 = vector.extract_strided_slice %13 {offsets = [0, 0], sizes = [2, 1], strides = [1, 1]} : vector<16x1xf32> to vector<2x1xf32>
    %cst_18 = arith.constant dense<0.000000e+00> : vector<2x128xf32>
    %20 = tpu.matmul %15, %14, %cst_18 {dimension_numbers = #tpu.dot_dimension_numbers<[1], [0], [0], [1], [0, 0, 1, 1], [], []>} : vector<2x32xf32>, vector<32x128xf32>, vector<2x128xf32> -> vector<2x128xf32>
    %21 = arith.addf %18, %20 : vector<2x128xf32>
    %22 = vector.extract_strided_slice %21 {offsets = [0, 0], sizes = [2, 96], strides = [1, 1]} : vector<2x128xf32> to vector<2x96xf32>
    %23 = arith.negf %22 : vector<2x96xf32>
    %24 = math.exp %23 : vector<2x96xf32>
    %cst_19 = arith.constant 1.000000e+00 : f32
    %25 = vector.broadcast %cst_19 : f32 to vector<2x96xf32>
    %26 = arith.addf %25, %24 : vector<2x96xf32>
    %27 = arith.divf %25, %26 : vector<2x96xf32>
    %28 = vector.extract_strided_slice %27 {offsets = [0, 0], sizes = [2, 32], strides = [1, 1]} : vector<2x96xf32> to vector<2x32xf32>
    %29 = vector.extract_strided_slice %27 {offsets = [0, 32], sizes = [2, 32], strides = [1, 1]} : vector<2x96xf32> to vector<2x32xf32>
    %30 = vector.extract_strided_slice %27 {offsets = [0, 64], sizes = [2, 32], strides = [1, 1]} : vector<2x96xf32> to vector<2x32xf32>
    %31 = vector.extract_strided_slice %21 {offsets = [0, 96], sizes = [2, 32], strides = [1, 1]} : vector<2x128xf32> to vector<2x32xf32>
    %32 = math.tanh %31 : vector<2x32xf32>
    %33 = arith.mulf %29, %16 : vector<2x32xf32>
    %34 = arith.mulf %28, %32 : vector<2x32xf32>
    %35 = arith.addf %33, %34 : vector<2x32xf32>
    %36 = math.tanh %35 : vector<2x32xf32>
    %37 = arith.mulf %30, %36 : vector<2x32xf32>
    %38 = vector.broadcast %19 : vector<2x1xf32> to vector<2x32xf32>
    %39 = arith.mulf %38, %37 : vector<2x32xf32>
    %40 = arith.addf %17, %39 : vector<2x32xf32>
    %41 = vector.extract_strided_slice %12 {offsets = [2, 0], sizes = [2, 128], strides = [1, 1]} : vector<16x128xf32> to vector<2x128xf32>
    %42 = vector.extract_strided_slice %13 {offsets = [2, 0], sizes = [2, 1], strides = [1, 1]} : vector<16x1xf32> to vector<2x1xf32>
    %cst_20 = arith.constant dense<0.000000e+00> : vector<2x128xf32>
    %43 = tpu.matmul %37, %14, %cst_20 {dimension_numbers = #tpu.dot_dimension_numbers<[1], [0], [0], [1], [0, 0, 1, 1], [], []>} : vector<2x32xf32>, vector<32x128xf32>, vector<2x128xf32> -> vector<2x128xf32>
    %44 = arith.addf %41, %43 : vector<2x128xf32>
    %45 = vector.extract_strided_slice %44 {offsets = [0, 0], sizes = [2, 96], strides = [1, 1]} : vector<2x128xf32> to vector<2x96xf32>
    %46 = arith.negf %45 : vector<2x96xf32>
    %47 = math.exp %46 : vector<2x96xf32>
    %cst_21 = arith.constant 1.000000e+00 : f32
    %48 = vector.broadcast %cst_21 : f32 to vector<2x96xf32>
    %49 = arith.addf %48, %47 : vector<2x96xf32>
    %50 = arith.divf %48, %49 : vector<2x96xf32>
    %51 = vector.extract_strided_slice %50 {offsets = [0, 0], sizes = [2, 32], strides = [1, 1]} : vector<2x96xf32> to vector<2x32xf32>
    %52 = vector.extract_strided_slice %50 {offsets = [0, 32], sizes = [2, 32], strides = [1, 1]} : vector<2x96xf32> to vector<2x32xf32>
    %53 = vector.extract_strided_slice %50 {offsets = [0, 64], sizes = [2, 32], strides = [1, 1]} : vector<2x96xf32> to vector<2x32xf32>
    %54 = vector.extract_strided_slice %44 {offsets = [0, 96], sizes = [2, 32], strides = [1, 1]} : vector<2x128xf32> to vector<2x32xf32>
    %55 = math.tanh %54 : vector<2x32xf32>
    %56 = arith.mulf %52, %35 : vector<2x32xf32>
    %57 = arith.mulf %51, %55 : vector<2x32xf32>
    %58 = arith.addf %56, %57 : vector<2x32xf32>
    %59 = math.tanh %58 : vector<2x32xf32>
    %60 = arith.mulf %53, %59 : vector<2x32xf32>
    %61 = vector.broadcast %42 : vector<2x1xf32> to vector<2x32xf32>
    %62 = arith.mulf %61, %60 : vector<2x32xf32>
    %63 = arith.addf %40, %62 : vector<2x32xf32>
    %64 = vector.extract_strided_slice %12 {offsets = [4, 0], sizes = [2, 128], strides = [1, 1]} : vector<16x128xf32> to vector<2x128xf32>
    %65 = vector.extract_strided_slice %13 {offsets = [4, 0], sizes = [2, 1], strides = [1, 1]} : vector<16x1xf32> to vector<2x1xf32>
    %cst_22 = arith.constant dense<0.000000e+00> : vector<2x128xf32>
    %66 = tpu.matmul %60, %14, %cst_22 {dimension_numbers = #tpu.dot_dimension_numbers<[1], [0], [0], [1], [0, 0, 1, 1], [], []>} : vector<2x32xf32>, vector<32x128xf32>, vector<2x128xf32> -> vector<2x128xf32>
    %67 = arith.addf %64, %66 : vector<2x128xf32>
    %68 = vector.extract_strided_slice %67 {offsets = [0, 0], sizes = [2, 96], strides = [1, 1]} : vector<2x128xf32> to vector<2x96xf32>
    %69 = arith.negf %68 : vector<2x96xf32>
    %70 = math.exp %69 : vector<2x96xf32>
    %cst_23 = arith.constant 1.000000e+00 : f32
    %71 = vector.broadcast %cst_23 : f32 to vector<2x96xf32>
    %72 = arith.addf %71, %70 : vector<2x96xf32>
    %73 = arith.divf %71, %72 : vector<2x96xf32>
    %74 = vector.extract_strided_slice %73 {offsets = [0, 0], sizes = [2, 32], strides = [1, 1]} : vector<2x96xf32> to vector<2x32xf32>
    %75 = vector.extract_strided_slice %73 {offsets = [0, 32], sizes = [2, 32], strides = [1, 1]} : vector<2x96xf32> to vector<2x32xf32>
    %76 = vector.extract_strided_slice %73 {offsets = [0, 64], sizes = [2, 32], strides = [1, 1]} : vector<2x96xf32> to vector<2x32xf32>
    %77 = vector.extract_strided_slice %67 {offsets = [0, 96], sizes = [2, 32], strides = [1, 1]} : vector<2x128xf32> to vector<2x32xf32>
    %78 = math.tanh %77 : vector<2x32xf32>
    %79 = arith.mulf %75, %58 : vector<2x32xf32>
    %80 = arith.mulf %74, %78 : vector<2x32xf32>
    %81 = arith.addf %79, %80 : vector<2x32xf32>
    %82 = math.tanh %81 : vector<2x32xf32>
    %83 = arith.mulf %76, %82 : vector<2x32xf32>
    %84 = vector.broadcast %65 : vector<2x1xf32> to vector<2x32xf32>
    %85 = arith.mulf %84, %83 : vector<2x32xf32>
    %86 = arith.addf %63, %85 : vector<2x32xf32>
    %87 = vector.extract_strided_slice %12 {offsets = [6, 0], sizes = [2, 128], strides = [1, 1]} : vector<16x128xf32> to vector<2x128xf32>
    %88 = vector.extract_strided_slice %13 {offsets = [6, 0], sizes = [2, 1], strides = [1, 1]} : vector<16x1xf32> to vector<2x1xf32>
    %cst_24 = arith.constant dense<0.000000e+00> : vector<2x128xf32>
    %89 = tpu.matmul %83, %14, %cst_24 {dimension_numbers = #tpu.dot_dimension_numbers<[1], [0], [0], [1], [0, 0, 1, 1], [], []>} : vector<2x32xf32>, vector<32x128xf32>, vector<2x128xf32> -> vector<2x128xf32>
    %90 = arith.addf %87, %89 : vector<2x128xf32>
    %91 = vector.extract_strided_slice %90 {offsets = [0, 0], sizes = [2, 96], strides = [1, 1]} : vector<2x128xf32> to vector<2x96xf32>
    %92 = arith.negf %91 : vector<2x96xf32>
    %93 = math.exp %92 : vector<2x96xf32>
    %cst_25 = arith.constant 1.000000e+00 : f32
    %94 = vector.broadcast %cst_25 : f32 to vector<2x96xf32>
    %95 = arith.addf %94, %93 : vector<2x96xf32>
    %96 = arith.divf %94, %95 : vector<2x96xf32>
    %97 = vector.extract_strided_slice %96 {offsets = [0, 0], sizes = [2, 32], strides = [1, 1]} : vector<2x96xf32> to vector<2x32xf32>
    %98 = vector.extract_strided_slice %96 {offsets = [0, 32], sizes = [2, 32], strides = [1, 1]} : vector<2x96xf32> to vector<2x32xf32>
    %99 = vector.extract_strided_slice %96 {offsets = [0, 64], sizes = [2, 32], strides = [1, 1]} : vector<2x96xf32> to vector<2x32xf32>
    %100 = vector.extract_strided_slice %90 {offsets = [0, 96], sizes = [2, 32], strides = [1, 1]} : vector<2x128xf32> to vector<2x32xf32>
    %101 = math.tanh %100 : vector<2x32xf32>
    %102 = arith.mulf %98, %81 : vector<2x32xf32>
    %103 = arith.mulf %97, %101 : vector<2x32xf32>
    %104 = arith.addf %102, %103 : vector<2x32xf32>
    %105 = math.tanh %104 : vector<2x32xf32>
    %106 = arith.mulf %99, %105 : vector<2x32xf32>
    %107 = vector.broadcast %88 : vector<2x1xf32> to vector<2x32xf32>
    %108 = arith.mulf %107, %106 : vector<2x32xf32>
    %109 = arith.addf %86, %108 : vector<2x32xf32>
    %110 = vector.extract_strided_slice %12 {offsets = [8, 0], sizes = [2, 128], strides = [1, 1]} : vector<16x128xf32> to vector<2x128xf32>
    %111 = vector.extract_strided_slice %13 {offsets = [8, 0], sizes = [2, 1], strides = [1, 1]} : vector<16x1xf32> to vector<2x1xf32>
    %cst_26 = arith.constant dense<0.000000e+00> : vector<2x128xf32>
    %112 = tpu.matmul %106, %14, %cst_26 {dimension_numbers = #tpu.dot_dimension_numbers<[1], [0], [0], [1], [0, 0, 1, 1], [], []>} : vector<2x32xf32>, vector<32x128xf32>, vector<2x128xf32> -> vector<2x128xf32>
    %113 = arith.addf %110, %112 : vector<2x128xf32>
    %114 = vector.extract_strided_slice %113 {offsets = [0, 0], sizes = [2, 96], strides = [1, 1]} : vector<2x128xf32> to vector<2x96xf32>
    %115 = arith.negf %114 : vector<2x96xf32>
    %116 = math.exp %115 : vector<2x96xf32>
    %cst_27 = arith.constant 1.000000e+00 : f32
    %117 = vector.broadcast %cst_27 : f32 to vector<2x96xf32>
    %118 = arith.addf %117, %116 : vector<2x96xf32>
    %119 = arith.divf %117, %118 : vector<2x96xf32>
    %120 = vector.extract_strided_slice %119 {offsets = [0, 0], sizes = [2, 32], strides = [1, 1]} : vector<2x96xf32> to vector<2x32xf32>
    %121 = vector.extract_strided_slice %119 {offsets = [0, 32], sizes = [2, 32], strides = [1, 1]} : vector<2x96xf32> to vector<2x32xf32>
    %122 = vector.extract_strided_slice %119 {offsets = [0, 64], sizes = [2, 32], strides = [1, 1]} : vector<2x96xf32> to vector<2x32xf32>
    %123 = vector.extract_strided_slice %113 {offsets = [0, 96], sizes = [2, 32], strides = [1, 1]} : vector<2x128xf32> to vector<2x32xf32>
    %124 = math.tanh %123 : vector<2x32xf32>
    %125 = arith.mulf %121, %104 : vector<2x32xf32>
    %126 = arith.mulf %120, %124 : vector<2x32xf32>
    %127 = arith.addf %125, %126 : vector<2x32xf32>
    %128 = math.tanh %127 : vector<2x32xf32>
    %129 = arith.mulf %122, %128 : vector<2x32xf32>
    %130 = vector.broadcast %111 : vector<2x1xf32> to vector<2x32xf32>
    %131 = arith.mulf %130, %129 : vector<2x32xf32>
    %132 = arith.addf %109, %131 : vector<2x32xf32>
    %133 = vector.extract_strided_slice %12 {offsets = [10, 0], sizes = [2, 128], strides = [1, 1]} : vector<16x128xf32> to vector<2x128xf32>
    %134 = vector.extract_strided_slice %13 {offsets = [10, 0], sizes = [2, 1], strides = [1, 1]} : vector<16x1xf32> to vector<2x1xf32>
    %cst_28 = arith.constant dense<0.000000e+00> : vector<2x128xf32>
    %135 = tpu.matmul %129, %14, %cst_28 {dimension_numbers = #tpu.dot_dimension_numbers<[1], [0], [0], [1], [0, 0, 1, 1], [], []>} : vector<2x32xf32>, vector<32x128xf32>, vector<2x128xf32> -> vector<2x128xf32>
    %136 = arith.addf %133, %135 : vector<2x128xf32>
    %137 = vector.extract_strided_slice %136 {offsets = [0, 0], sizes = [2, 96], strides = [1, 1]} : vector<2x128xf32> to vector<2x96xf32>
    %138 = arith.negf %137 : vector<2x96xf32>
    %139 = math.exp %138 : vector<2x96xf32>
    %cst_29 = arith.constant 1.000000e+00 : f32
    %140 = vector.broadcast %cst_29 : f32 to vector<2x96xf32>
    %141 = arith.addf %140, %139 : vector<2x96xf32>
    %142 = arith.divf %140, %141 : vector<2x96xf32>
    %143 = vector.extract_strided_slice %142 {offsets = [0, 0], sizes = [2, 32], strides = [1, 1]} : vector<2x96xf32> to vector<2x32xf32>
    %144 = vector.extract_strided_slice %142 {offsets = [0, 32], sizes = [2, 32], strides = [1, 1]} : vector<2x96xf32> to vector<2x32xf32>
    %145 = vector.extract_strided_slice %142 {offsets = [0, 64], sizes = [2, 32], strides = [1, 1]} : vector<2x96xf32> to vector<2x32xf32>
    %146 = vector.extract_strided_slice %136 {offsets = [0, 96], sizes = [2, 32], strides = [1, 1]} : vector<2x128xf32> to vector<2x32xf32>
    %147 = math.tanh %146 : vector<2x32xf32>
    %148 = arith.mulf %144, %127 : vector<2x32xf32>
    %149 = arith.mulf %143, %147 : vector<2x32xf32>
    %150 = arith.addf %148, %149 : vector<2x32xf32>
    %151 = math.tanh %150 : vector<2x32xf32>
    %152 = arith.mulf %145, %151 : vector<2x32xf32>
    %153 = vector.broadcast %134 : vector<2x1xf32> to vector<2x32xf32>
    %154 = arith.mulf %153, %152 : vector<2x32xf32>
    %155 = arith.addf %132, %154 : vector<2x32xf32>
    %156 = vector.extract_strided_slice %12 {offsets = [12, 0], sizes = [2, 128], strides = [1, 1]} : vector<16x128xf32> to vector<2x128xf32>
    %157 = vector.extract_strided_slice %13 {offsets = [12, 0], sizes = [2, 1], strides = [1, 1]} : vector<16x1xf32> to vector<2x1xf32>
    %cst_30 = arith.constant dense<0.000000e+00> : vector<2x128xf32>
    %158 = tpu.matmul %152, %14, %cst_30 {dimension_numbers = #tpu.dot_dimension_numbers<[1], [0], [0], [1], [0, 0, 1, 1], [], []>} : vector<2x32xf32>, vector<32x128xf32>, vector<2x128xf32> -> vector<2x128xf32>
    %159 = arith.addf %156, %158 : vector<2x128xf32>
    %160 = vector.extract_strided_slice %159 {offsets = [0, 0], sizes = [2, 96], strides = [1, 1]} : vector<2x128xf32> to vector<2x96xf32>
    %161 = arith.negf %160 : vector<2x96xf32>
    %162 = math.exp %161 : vector<2x96xf32>
    %cst_31 = arith.constant 1.000000e+00 : f32
    %163 = vector.broadcast %cst_31 : f32 to vector<2x96xf32>
    %164 = arith.addf %163, %162 : vector<2x96xf32>
    %165 = arith.divf %163, %164 : vector<2x96xf32>
    %166 = vector.extract_strided_slice %165 {offsets = [0, 0], sizes = [2, 32], strides = [1, 1]} : vector<2x96xf32> to vector<2x32xf32>
    %167 = vector.extract_strided_slice %165 {offsets = [0, 32], sizes = [2, 32], strides = [1, 1]} : vector<2x96xf32> to vector<2x32xf32>
    %168 = vector.extract_strided_slice %165 {offsets = [0, 64], sizes = [2, 32], strides = [1, 1]} : vector<2x96xf32> to vector<2x32xf32>
    %169 = vector.extract_strided_slice %159 {offsets = [0, 96], sizes = [2, 32], strides = [1, 1]} : vector<2x128xf32> to vector<2x32xf32>
    %170 = math.tanh %169 : vector<2x32xf32>
    %171 = arith.mulf %167, %150 : vector<2x32xf32>
    %172 = arith.mulf %166, %170 : vector<2x32xf32>
    %173 = arith.addf %171, %172 : vector<2x32xf32>
    %174 = math.tanh %173 : vector<2x32xf32>
    %175 = arith.mulf %168, %174 : vector<2x32xf32>
    %176 = vector.broadcast %157 : vector<2x1xf32> to vector<2x32xf32>
    %177 = arith.mulf %176, %175 : vector<2x32xf32>
    %178 = arith.addf %155, %177 : vector<2x32xf32>
    %179 = vector.extract_strided_slice %12 {offsets = [14, 0], sizes = [2, 128], strides = [1, 1]} : vector<16x128xf32> to vector<2x128xf32>
    %180 = vector.extract_strided_slice %13 {offsets = [14, 0], sizes = [2, 1], strides = [1, 1]} : vector<16x1xf32> to vector<2x1xf32>
    %cst_32 = arith.constant dense<0.000000e+00> : vector<2x128xf32>
    %181 = tpu.matmul %175, %14, %cst_32 {dimension_numbers = #tpu.dot_dimension_numbers<[1], [0], [0], [1], [0, 0, 1, 1], [], []>} : vector<2x32xf32>, vector<32x128xf32>, vector<2x128xf32> -> vector<2x128xf32>
    %182 = arith.addf %179, %181 : vector<2x128xf32>
    %183 = vector.extract_strided_slice %182 {offsets = [0, 0], sizes = [2, 96], strides = [1, 1]} : vector<2x128xf32> to vector<2x96xf32>
    %184 = arith.negf %183 : vector<2x96xf32>
    %185 = math.exp %184 : vector<2x96xf32>
    %cst_33 = arith.constant 1.000000e+00 : f32
    %186 = vector.broadcast %cst_33 : f32 to vector<2x96xf32>
    %187 = arith.addf %186, %185 : vector<2x96xf32>
    %188 = arith.divf %186, %187 : vector<2x96xf32>
    %189 = vector.extract_strided_slice %188 {offsets = [0, 0], sizes = [2, 32], strides = [1, 1]} : vector<2x96xf32> to vector<2x32xf32>
    %190 = vector.extract_strided_slice %188 {offsets = [0, 32], sizes = [2, 32], strides = [1, 1]} : vector<2x96xf32> to vector<2x32xf32>
    %191 = vector.extract_strided_slice %188 {offsets = [0, 64], sizes = [2, 32], strides = [1, 1]} : vector<2x96xf32> to vector<2x32xf32>
    %192 = vector.extract_strided_slice %182 {offsets = [0, 96], sizes = [2, 32], strides = [1, 1]} : vector<2x128xf32> to vector<2x32xf32>
    %193 = math.tanh %192 : vector<2x32xf32>
    %194 = arith.mulf %190, %173 : vector<2x32xf32>
    %195 = arith.mulf %189, %193 : vector<2x32xf32>
    %196 = arith.addf %194, %195 : vector<2x32xf32>
    %197 = math.tanh %196 : vector<2x32xf32>
    %198 = arith.mulf %191, %197 : vector<2x32xf32>
    %199 = vector.broadcast %180 : vector<2x1xf32> to vector<2x32xf32>
    %200 = arith.mulf %199, %198 : vector<2x32xf32>
    %201 = arith.addf %178, %200 : vector<2x32xf32>
    %c0_34 = arith.constant 0 : index
    %c0_35 = arith.constant 0 : index
    %202 = vector.load %arg7[%c0_34, %c0_35] : memref<32x64xf32, #tpu.memory_space<vmem>>, vector<32x64xf32>
    %cst_36 = arith.constant dense<0.000000e+00> : vector<2x64xf32>
    %203 = tpu.matmul %201, %202, %cst_36 {dimension_numbers = #tpu.dot_dimension_numbers<[1], [0], [0], [1], [0, 0, 1, 1], [], []>} : vector<2x32xf32>, vector<32x64xf32>, vector<2x64xf32> -> vector<2x64xf32>
    %c0_37 = arith.constant 0 : index
    %c0_38 = arith.constant 0 : index
    %204 = vector.load %arg8[%c0_37, %c0_38] : memref<1x64xf32, #tpu.memory_space<vmem>>, vector<1x64xf32>
    %205 = vector.broadcast %204 : vector<1x64xf32> to vector<2x64xf32>
    %206 = arith.addf %203, %205 : vector<2x64xf32>
    %cst_39 = arith.constant 0.000000e+00 : f32
    %207 = vector.broadcast %cst_39 : f32 to vector<2x64xf32>
    %208 = arith.maximumf %206, %207 : vector<2x64xf32>
    %c0_40 = arith.constant 0 : index
    %c0_41 = arith.constant 0 : index
    %209 = vector.load %arg9[%c0_40, %c0_41] : memref<64x128xf32, #tpu.memory_space<vmem>>, vector<64x128xf32>
    %cst_42 = arith.constant dense<0.000000e+00> : vector<2x128xf32>
    %210 = tpu.matmul %208, %209, %cst_42 {dimension_numbers = #tpu.dot_dimension_numbers<[1], [0], [0], [1], [0, 0, 1, 1], [], []>} : vector<2x64xf32>, vector<64x128xf32>, vector<2x128xf32> -> vector<2x128xf32>
    %c0_43 = arith.constant 0 : index
    %c0_44 = arith.constant 0 : index
    %211 = vector.load %arg10[%c0_43, %c0_44] : memref<1x128xf32, #tpu.memory_space<vmem>>, vector<1x128xf32>
    %212 = vector.broadcast %211 : vector<1x128xf32> to vector<2x128xf32>
    %213 = arith.addf %210, %212 : vector<2x128xf32>
    %c0_45 = arith.constant 0 : index
    %c0_46 = arith.constant 0 : index
    %214 = vector.load %arg11[%c0_45, %c0_46] : memref<2x128xf32, #tpu.memory_space<vmem>>, vector<2x128xf32>
    tpu.vector_store %arg11[%c0_45, %c0_46], %213 {strides = array<i32>} : memref<2x128xf32, #tpu.memory_space<vmem>>, vector<2x128xf32>,
    return
  }
}

</mosaic_0001>

<llo_original>
// kernel: dqn_lstm_forward.1
$region0: #{dqn_lstm_forward.1}
  #allocation0 [shape = 'u32[]', space=smem, size = 0x4, offset = 0x4, fixed_abs, tag = 'smem constant byte address 0x4 - core index']
  #allocation1 [shape = 'u32[144,128]{1,0:T(1,128)}', space=vmem, size = 0x12000, scoped, tag = 'internal scratch']
  %s0 = inlined_call_operand.vmem [shape: f32[16,24], index: 0, kind: input, shape index: {}]
  %s1 = inlined_call_operand.vmem [shape: f32[16,1], index: 1, kind: input, shape index: {}]
  %s2 = inlined_call_operand.vmem [shape: f32[24,64], index: 2, kind: input, shape index: {}]
  %s3 = inlined_call_operand.vmem [shape: f32[1,64], index: 3, kind: input, shape index: {}]
  %s4 = inlined_call_operand.vmem [shape: f32[64,128], index: 4, kind: input, shape index: {}]
  %s5 = inlined_call_operand.vmem [shape: f32[1,128], index: 5, kind: input, shape index: {}]
  %s6 = inlined_call_operand.vmem [shape: f32[32,128], index: 6, kind: input, shape index: {}]
  %s7 = inlined_call_operand.vmem [shape: f32[32,64], index: 7, kind: input, shape index: {}]
  %s8 = inlined_call_operand.vmem [shape: f32[1,64], index: 8, kind: input, shape index: {}]
  %s9 = inlined_call_operand.vmem [shape: f32[64,128], index: 9, kind: input, shape index: {}]
  %s10 = inlined_call_operand.vmem [shape: f32[1,128], index: 10, kind: input, shape index: {}]
  %s11 = inlined_call_operand.hbm [shape: f32[2,128], index: 11, kind: output, shape index: {}]
  %s12 = sld [smem:[#allocation0]]
  $region54: #{dqn_lstm_forward.1} parent=0
    _
  %s14 = ssub.s32 1, %s12
  %s15 = scalar_select 0, %s14, %s12
  $region1: #{dqn_lstm_forward.1} parent=0
    #allocation2 [shape = 'u8[1024]{0}', space=vmem, size = 0x400, scoped, tag = 'output window, operand 0, single buffered']
    #allocation3 [shape = 's32[1]{0}', space=sflag, size = 0x4, scoped, tag = 'scoped memory for dqn_lstm_forward.1']
    %16 = vsyncpa [#allocation3], 0
    // Predicated region
    $region2: #{dqn_lstm_forward.1} parent=1 // pred_check
      _
    $region3: #{dqn_lstm_forward.1} parent=1 // pred_check_branch
      %18 = sbr.rel (0) target = $region5
    $region4: #{dqn_lstm_forward.1} parent=1 // pred_region
      _
    $region5: #{dqn_lstm_forward.1} parent=1 // pred_fallthru
      _
    // Predicated region
    $region6: #{dqn_lstm_forward.1} parent=1 // pred_check
      _
    $region7: #{dqn_lstm_forward.1} parent=1 // pred_check_branch
      %20 = sbr.rel (0) target = $region9
    $region8: #{dqn_lstm_forward.1} parent=1 // pred_region
      _
    $region9: #{dqn_lstm_forward.1} parent=1 // pred_fallthru
      _
    // Predicated region
    $region10: #{dqn_lstm_forward.1} parent=1 // pred_check
      _
    $region11: #{dqn_lstm_forward.1} parent=1 // pred_check_branch
      %22 = sbr.rel (0) target = $region13
    $region12: #{dqn_lstm_forward.1} parent=1 // pred_region
      _
    $region13: #{dqn_lstm_forward.1} parent=1 // pred_fallthru
      _
    // Predicated region
    $region14: #{dqn_lstm_forward.1} parent=1 // pred_check
      _
    $region15: #{dqn_lstm_forward.1} parent=1 // pred_check_branch
      %24 = sbr.rel (0) target = $region17
    $region16: #{dqn_lstm_forward.1} parent=1 // pred_region
      _
    $region17: #{dqn_lstm_forward.1} parent=1 // pred_fallthru
      _
    // Predicated region
    $region18: #{dqn_lstm_forward.1} parent=1 // pred_check
      _
    $region19: #{dqn_lstm_forward.1} parent=1 // pred_check_branch
      %26 = sbr.rel (0) target = $region21
    $region20: #{dqn_lstm_forward.1} parent=1 // pred_region
      _
    $region21: #{dqn_lstm_forward.1} parent=1 // pred_fallthru
      _
    // Predicated region
    $region22: #{dqn_lstm_forward.1} parent=1 // pred_check
      _
    $region23: #{dqn_lstm_forward.1} parent=1 // pred_check_branch
      %28 = sbr.rel (0) target = $region25
    $region24: #{dqn_lstm_forward.1} parent=1 // pred_region
      _
    $region25: #{dqn_lstm_forward.1} parent=1 // pred_fallthru
      _
    // Predicated region
    $region26: #{dqn_lstm_forward.1} parent=1 // pred_check
      _
    $region27: #{dqn_lstm_forward.1} parent=1 // pred_check_branch
      %30 = sbr.rel (0) target = $region29
    $region28: #{dqn_lstm_forward.1} parent=1 // pred_region
      _
    $region29: #{dqn_lstm_forward.1} parent=1 // pred_fallthru
      _
    // Predicated region
    $region30: #{dqn_lstm_forward.1} parent=1 // pred_check
      _
    $region31: #{dqn_lstm_forward.1} parent=1 // pred_check_branch
      %32 = sbr.rel (0) target = $region33
    $region32: #{dqn_lstm_forward.1} parent=1 // pred_region
      _
    $region33: #{dqn_lstm_forward.1} parent=1 // pred_fallthru
      _
    // Predicated region
    $region34: #{dqn_lstm_forward.1} parent=1 // pred_check
      _
    $region35: #{dqn_lstm_forward.1} parent=1 // pred_check_branch
      %34 = sbr.rel (0) target = $region37
    $region36: #{dqn_lstm_forward.1} parent=1 // pred_region
      _
    $region37: #{dqn_lstm_forward.1} parent=1 // pred_fallthru
      _
    // Predicated region
    $region38: #{dqn_lstm_forward.1} parent=1 // pred_check
      _
    $region39: #{dqn_lstm_forward.1} parent=1 // pred_check_branch
      %36 = sbr.rel (0) target = $region41
    $region40: #{dqn_lstm_forward.1} parent=1 // pred_region
      _
    $region41: #{dqn_lstm_forward.1} parent=1 // pred_fallthru
      _
    // Predicated region
    $region42: #{dqn_lstm_forward.1} parent=1 // pred_check
      _
    $region43: #{dqn_lstm_forward.1} parent=1 // pred_check_branch
      %38 = sbr.rel (0) target = $region45
    $region44: #{dqn_lstm_forward.1} parent=1 // pred_region
      _
    $region45: #{dqn_lstm_forward.1} parent=1 // pred_fallthru
      _
    %v39 = vld [vmem:[%s0] sm:$0xff]
    %v40 = vld [vmem:[%s0 + $0x8] sm:$0xff]
    %v41 = vld [vmem:[%s2] sm:$0xff]
    %v42 = vld [vmem:[%s2 + $0x8] sm:$0xff]
    %v43 = vld [vmem:[%s2 + $0x10] sm:$0xff]
    %v44 = vld [vmem:[%s3] sm:$0x1]
    %v46 = vlaneseq
    %v47 = vshrl.u32 %v46, 7
    %v48 = vsub.s32 0, %v47
    %v49 = vrot.slane %v44, %v48
    %vm51 = vcmask 195584
    %v53 = vsel %vm51, %v39, 0
    %v56 = vsel %vm51, %v40, 0
    %58 = vmatprep.subr.mxu0 0.0
    %59 = vmatpush1.msra.mxu0 %v41
    %60 = vmatprep.subr.mxu0 0.0
    %61 = vmatpush1.msra.mxu0 %v42
    %62 = vmatprep.subr.mxu0 0.0
    %63 = vmatpush1.msra.mxu0 %v43
    %64 = vmatprep.subr.mxu0 0.0
    %65 = vmatpush1.msra.mxu0 0.0
    %66 = vmatprep.subr.mxu0 0.0
    %67 = vmatpush1.msra.mxu0 0.0
    %68 = vmatprep.subr.mxu0 0.0
    %69 = vmatpush1.msra.mxu0 0.0
    %70 = vmatprep.subr.mxu0 0.0
    %71 = vmatpush1.msra.mxu0 0.0
    %72 = vmatprep.subr.mxu0 0.0
    %73 = vmatpush1.msra.mxu0 0.0
    %74 = vmatprep.subr.mxu0 0.0
    %75 = vmatpush1.msra.mxu0 0.0
    %76 = vmatprep.subr.mxu0 0.0
    %77 = vmatpush1.msra.mxu0 0.0
    %78 = vmatprep.subr.mxu0 0.0
    %79 = vmatpush1.msra.mxu0 0.0
    %80 = vmatprep.subr.mxu0 0.0
    %81 = vmatpush1.msra.mxu0 0.0
    %82 = vmatprep.subr.mxu0 0.0
    %83 = vmatpush1.msra.mxu0 0.0
    %84 = vmatprep.subr.mxu0 0.0
    %85 = vmatpush1.msra.mxu0 0.0
    %86 = vmatprep.subr.mxu0 0.0
    %87 = vmatpush1.msra.mxu0 0.0
    %88 = vmatprep.subr.mxu0 0.0
    %89 = vmatpush1.msra.mxu0 0.0
    %90 = vmatprep.subr.mxu0 0.0
    %91 = vmatpush1.msra.mxu0 0.0
    %92 = vmatprep.subr.mxu0 0.0
    %93 = vmatpush1.msra.mxu0 0.0
    %94 = vmatprep.subr.mxu0 0.0
    %95 = vmatpush1.msra.mxu0 0.0
    %96 = vmatprep.subr.mxu0 0.0
    %97 = vmatpush1.msra.mxu0 0.0
    %98 = vmatprep.subr.mxu0 0.0
    %99 = vmatpush1.msra.mxu0 0.0
    %100 = vmatprep.subr.mxu0 0.0
    %101 = vmatpush1.msra.mxu0 0.0
    %102 = vmatprep.subr.mxu0 0.0
    %103 = vmatpush1.msra.mxu0 0.0
    %104 = vmatprep.subr.mxu0 0.0
    %105 = vmatpush1.msra.mxu0 0.0
    %106 = vmatprep.subr.mxu0 0.0
    %107 = vmatpush1.msra.mxu0 0.0
    %108 = vmatprep.subr.mxu0 0.0
    %109 = vmatpush1.msra.mxu0 0.0
    %110 = vmatprep.subr.mxu0 0.0
    %111 = vmatpush1.msra.mxu0 0.0
    %112 = vmatprep.subr.mxu0 0.0
    %113 = vmatpush1.msra.mxu0 0.0
    %114 = vmatprep.subr.mxu0 0.0
    %115 = vmatpush1.msra.mxu0 0.0
    %116 = vmatprep.subr.mxu0 0.0
    %117 = vmatpush1.msra.mxu0 0.0
    %118 = vmatprep.subr.mxu0 0.0
    %119 = vmatpush1.msra.mxu0 0.0
    %120 = vmatprep.subr.mxu0 0.0
    %121 = vmatpush1.msra.mxu0 0.0
    %122 = vmatprep.mubr.f32.mxu0 0.0
    %123 = vmatmul.mubr.f32.gmra.mrb[0].mxu0 %v53
    %v124 = vpop.f32.mrb[0].mxu0
    %v125 = vadd.f32 %v49, %v124
    %v126 = vpop.f32.mrb[0].mxu0
    %127 = vmatprep.mubr.f32.mxu0 0.0
    %128 = vmatmul.mubr.f32.gmra.mrb[0].mxu0 %v56
    %v129 = vpop.f32.mrb[0].mxu0
    %v130 = vadd.f32 %v49, %v129
    %v131 = vpop.f32.mrb[0].mxu0
    %132 = vdwg.mxu0
    %v133 = vmax.f32 %v125, 0.0
    %v134 = vmax.f32 %v130, 0.0
    %v135 = vld [vmem:[%s4] sm:$0xff]
    %v136 = vld [vmem:[%s4 + $0x8] sm:$0xff]
    %v137 = vld [vmem:[%s4 + $0x10] sm:$0xff]
    %v138 = vld [vmem:[%s4 + $0x18] sm:$0xff]
    %v139 = vld [vmem:[%s4 + $0x20] sm:$0xff]
    %v140 = vld [vmem:[%s4 + $0x28] sm:$0xff]
    %v141 = vld [vmem:[%s4 + $0x30] sm:$0xff]
    %v142 = vld [vmem:[%s4 + $0x38] sm:$0xff]
    %v143 = vld [vmem:[%s5] sm:$0x1]
    %v145 = vlaneseq
    %v146 = vshrl.u32 %v145, 7
    %v147 = vsub.s32 0, %v146
    %v148 = vrot.slane %v143, %v147
    %vm150 = vcmask 523264
    %v152 = vsel %vm150, %v133, 0
    %v155 = vsel %vm150, %v134, 0
    %157 = vmatprep.subr.mxu0 0.0
    %158 = vmatpush1.msra.mxu0 %v135
    %159 = vmatprep.subr.mxu0 0.0
    %160 = vmatpush1.msra.mxu0 %v136
    %161 = vmatprep.subr.mxu0 0.0
    %162 = vmatpush1.msra.mxu0 %v137
    %163 = vmatprep.subr.mxu0 0.0
    %164 = vmatpush1.msra.mxu0 %v138
    %165 = vmatprep.subr.mxu0 0.0
    %166 = vmatpush1.msra.mxu0 %v139
    %167 = vmatprep.subr.mxu0 0.0
    %168 = vmatpush1.msra.mxu0 %v140
    %169 = vmatprep.subr.mxu0 0.0
    %170 = vmatpush1.msra.mxu0 %v141
    %171 = vmatprep.subr.mxu0 0.0
    %172 = vmatpush1.msra.mxu0 %v142
    %173 = vmatprep.subr.mxu0 0.0
    %174 = vmatpush1.msra.mxu0 0.0
    %175 = vmatprep.subr.mxu0 0.0
    %176 = vmatpush1.msra.mxu0 0.0
    %177 = vmatprep.subr.mxu0 0.0
    %178 = vmatpush1.msra.mxu0 0.0
    %179 = vmatprep.subr.mxu0 0.0
    %180 = vmatpush1.msra.mxu0 0.0
    %181 = vmatprep.subr.mxu0 0.0
    %182 = vmatpush1.msra.mxu0 0.0
    %183 = vmatprep.subr.mxu0 0.0
    %184 = vmatpush1.msra.mxu0 0.0
    %185 = vmatprep.subr.mxu0 0.0
    %186 = vmatpush1.msra.mxu0 0.0
    %187 = vmatprep.subr.mxu0 0.0
    %188 = vmatpush1.msra.mxu0 0.0
    %189 = vmatprep.subr.mxu0 0.0
    %190 = vmatpush1.msra.mxu0 0.0
    %191 = vmatprep.subr.mxu0 0.0
    %192 = vmatpush1.msra.mxu0 0.0
    %193 = vmatprep.subr.mxu0 0.0
    %194 = vmatpush1.msra.mxu0 0.0
    %195 = vmatprep.subr.mxu0 0.0
    %196 = vmatpush1.msra.mxu0 0.0
    %197 = vmatprep.subr.mxu0 0.0
    %198 = vmatpush1.msra.mxu0 0.0
    %199 = vmatprep.subr.mxu0 0.0
    %200 = vmatpush1.msra.mxu0 0.0
    %201 = vmatprep.subr.mxu0 0.0
    %202 = vmatpush1.msra.mxu0 0.0
    %203 = vmatprep.subr.mxu0 0.0
    %204 = vmatpush1.msra.mxu0 0.0
    %205 = vmatprep.subr.mxu0 0.0
    %206 = vmatpush1.msra.mxu0 0.0
    %207 = vmatprep.subr.mxu0 0.0
    %208 = vmatpush1.msra.mxu0 0.0
    %209 = vmatprep.subr.mxu0 0.0
    %210 = vmatpush1.msra.mxu0 0.0
    %211 = vmatprep.subr.mxu0 0.0
    %212 = vmatpush1.msra.mxu0 0.0
    %213 = vmatprep.subr.mxu0 0.0
    %214 = vmatpush1.msra.mxu0 0.0
    %215 = vmatprep.subr.mxu0 0.0
    %216 = vmatpush1.msra.mxu0 0.0
    %217 = vmatprep.subr.mxu0 0.0
    %218 = vmatpush1.msra.mxu0 0.0
    %219 = vmatprep.subr.mxu0 0.0
    %220 = vmatpush1.msra.mxu0 0.0
    %221 = vmatprep.mubr.f32.mxu0 0.0
    %222 = vmatmul.mubr.f32.gmra.mrb[0].mxu0 %v152
    %v223 = vpop.f32.mrb[0].mxu0
    %v224 = vadd.f32 %v148, %v223
    %v225 = vpop.f32.mrb[0].mxu0
    %226 = vmatprep.mubr.f32.mxu0 0.0
    %227 = vmatmul.mubr.f32.gmra.mrb[0].mxu0 %v155
    %v228 = vpop.f32.mrb[0].mxu0
    %v229 = vadd.f32 %v148, %v228
    %v230 = vpop.f32.mrb[0].mxu0
    %231 = vdwg.mxu0
    %v232 = vld [vmem:[%s1] sm:$0xff]
    %v233 = vld [vmem:[%s1 + $0x8] sm:$0xff]
    %v234 = vld [vmem:[%s6] sm:$0xff]
    %v235 = vld [vmem:[%s6 + $0x8] sm:$0xff]
    %v236 = vld [vmem:[%s6 + $0x10] sm:$0xff]
    %v237 = vld [vmem:[%s6 + $0x18] sm:$0xff]
    %vm238 = vcmask 261120
    %v240 = vsel %vm238, 0.0, 0
    %242 = vmatprep.subr.mxu0 0.0
    %243 = vmatpush1.msra.mxu0 %v234
    %244 = vmatprep.subr.mxu0 0.0
    %245 = vmatpush1.msra.mxu0 %v235
    %246 = vmatprep.subr.mxu0 0.0
    %247 = vmatpush1.msra.mxu0 %v236
    %248 = vmatprep.subr.mxu0 0.0
    %249 = vmatpush1.msra.mxu0 %v237
    %250 = vmatprep.subr.mxu0 0.0
    %251 = vmatpush1.msra.mxu0 0.0
    %252 = vmatprep.subr.mxu0 0.0
    %253 = vmatpush1.msra.mxu0 0.0
    %254 = vmatprep.subr.mxu0 0.0
    %255 = vmatpush1.msra.mxu0 0.0
    %256 = vmatprep.subr.mxu0 0.0
    %257 = vmatpush1.msra.mxu0 0.0
    %258 = vmatprep.subr.mxu0 0.0
    %259 = vmatpush1.msra.mxu0 0.0
    %260 = vmatprep.subr.mxu0 0.0
    %261 = vmatpush1.msra.mxu0 0.0
    %262 = vmatprep.subr.mxu0 0.0
    %263 = vmatpush1.msra.mxu0 0.0
    %264 = vmatprep.subr.mxu0 0.0
    %265 = vmatpush1.msra.mxu0 0.0
    %266 = vmatprep.subr.mxu0 0.0
    %267 = vmatpush1.msra.mxu0 0.0
    %268 = vmatprep.subr.mxu0 0.0
    %269 = vmatpush1.msra.mxu0 0.0
    %270 = vmatprep.subr.mxu0 0.0
    %271 = vmatpush1.msra.mxu0 0.0
    %272 = vmatprep.subr.mxu0 0.0
    %273 = vmatpush1.msra.mxu0 0.0
    %274 = vmatprep.subr.mxu0 0.0
    %275 = vmatpush1.msra.mxu0 0.0
    %276 = vmatprep.subr.mxu0 0.0
    %277 = vmatpush1.msra.mxu0 0.0
    %278 = vmatprep.subr.mxu0 0.0
    %279 = vmatpush1.msra.mxu0 0.0
    %280 = vmatprep.subr.mxu0 0.0
    %281 = vmatpush1.msra.mxu0 0.0
    %282 = vmatprep.subr.mxu0 0.0
    %283 = vmatpush1.msra.mxu0 0.0
    %284 = vmatprep.subr.mxu0 0.0
    %285 = vmatpush1.msra.mxu0 0.0
    %286 = vmatprep.subr.mxu0 0.0
    %287 = vmatpush1.msra.mxu0 0.0
    %288 = vmatprep.subr.mxu0 0.0
    %289 = vmatpush1.msra.mxu0 0.0
    %290 = vmatprep.subr.mxu0 0.0
    %291 = vmatpush1.msra.mxu0 0.0
    %292 = vmatprep.subr.mxu0 0.0
    %293 = vmatpush1.msra.mxu0 0.0
    %294 = vmatprep.subr.mxu0 0.0
    %295 = vmatpush1.msra.mxu0 0.0
    %296 = vmatprep.subr.mxu0 0.0
    %297 = vmatpush1.msra.mxu0 0.0
    %298 = vmatprep.subr.mxu0 0.0
    %299 = vmatpush1.msra.mxu0 0.0
    %300 = vmatprep.subr.mxu0 0.0
    %301 = vmatpush1.msra.mxu0 0.0
    %302 = vmatprep.subr.mxu0 0.0
    %303 = vmatpush1.msra.mxu0 0.0
    %304 = vmatprep.subr.mxu0 0.0
    %305 = vmatpush1.msra.mxu0 0.0
    %306 = vmatprep.mubr.f32.mxu0 0.0
    %307 = vmatmul.mubr.f32.gmra.mrb[0].mxu0 %v240
    %v308 = vpop.f32.mrb[0].mxu0
    %v309 = vadd.f32 0.0, %v308
    %v310 = vpop.f32.mrb[0].mxu0
    %311 = vdwg.mxu0
    %v312 = vadd.f32 %v224, %v309
    %v313 = vxor.u32 %v312, 2147483648
    %v314 = vmul.f32 %v313, 1.442695
    %v315 = vpow.pop %v314
    %v316 = vadd.f32 %v315, 1.0
    %v317 = vrcp.pop %v316
    %v318 = vmul.f32 1.0, %v317
    %v319 = vtanh.pop %v312
    %v320 = vmul.f32 %v318, 0.0
    %322 = vrot.lane.b32.xlu0 %v319, 32
    %v323 = vpop.permute.xlu0 %322
    %v325 = vmul.f32 %v318, %v323
    %327 = vrot.lane.b32.xlu0 %v325, 32
    %v328 = vpop.permute.xlu0 %327
    %v330 = vadd.f32 %v320, %v328
    %v331 = vtanh.pop %v330
    %333 = vrot.lane.b32.xlu0 %v331, 32
    %v334 = vpop.permute.xlu0 %333
    %v336 = vmul.f32 %v318, %v334
    %338 = vset.pattern.permute.xlu0 0
    %339 = vperm.xlu0 %338, %v232
    %v340 = vpop.permute.xlu0 %339
    %v342 = vmul.f32 %v340, %v336
    %v343 = vadd.f32 %v342, 0.0
    %345 = vrot.lane.b32.xlu0 %v336, 64
    %v346 = vpop.permute.xlu0 %345
    %v347 = vsel %vm238, %v346, 0
    %349 = vmatprep.subr.mxu0 0.0
    %350 = vmatpush1.msra.mxu0 %v234
    %351 = vmatprep.subr.mxu0 0.0
    %352 = vmatpush1.msra.mxu0 %v235
    %353 = vmatprep.subr.mxu0 0.0
    %354 = vmatpush1.msra.mxu0 %v236
    %355 = vmatprep.subr.mxu0 0.0
    %356 = vmatpush1.msra.mxu0 %v237
    %357 = vmatprep.subr.mxu0 0.0
    %358 = vmatpush1.msra.mxu0 0.0
    %359 = vmatprep.subr.mxu0 0.0
    %360 = vmatpush1.msra.mxu0 0.0
    %361 = vmatprep.subr.mxu0 0.0
    %362 = vmatpush1.msra.mxu0 0.0
    %363 = vmatprep.subr.mxu0 0.0
    %364 = vmatpush1.msra.mxu0 0.0
    %365 = vmatprep.subr.mxu0 0.0
    %366 = vmatpush1.msra.mxu0 0.0
    %367 = vmatprep.subr.mxu0 0.0
    %368 = vmatpush1.msra.mxu0 0.0
    %369 = vmatprep.subr.mxu0 0.0
    %370 = vmatpush1.msra.mxu0 0.0
    %371 = vmatprep.subr.mxu0 0.0
    %372 = vmatpush1.msra.mxu0 0.0
    %373 = vmatprep.subr.mxu0 0.0
    %374 = vmatpush1.msra.mxu0 0.0
    %375 = vmatprep.subr.mxu0 0.0
    %376 = vmatpush1.msra.mxu0 0.0
    %377 = vmatprep.subr.mxu0 0.0
    %378 = vmatpush1.msra.mxu0 0.0
    %379 = vmatprep.subr.mxu0 0.0
    %380 = vmatpush1.msra.mxu0 0.0
    %381 = vmatprep.subr.mxu0 0.0
    %382 = vmatpush1.msra.mxu0 0.0
    %383 = vmatprep.subr.mxu0 0.0
    %384 = vmatpush1.msra.mxu0 0.0
    %385 = vmatprep.subr.mxu0 0.0
    %386 = vmatpush1.msra.mxu0 0.0
    %387 = vmatprep.subr.mxu0 0.0
    %388 = vmatpush1.msra.mxu0 0.0
    %389 = vmatprep.subr.mxu0 0.0
    %390 = vmatpush1.msra.mxu0 0.0
    %391 = vmatprep.subr.mxu0 0.0
    %392 = vmatpush1.msra.mxu0 0.0
    %393 = vmatprep.subr.mxu0 0.0
    %394 = vmatpush1.msra.mxu0 0.0
    %395 = vmatprep.subr.mxu0 0.0
    %396 = vmatpush1.msra.mxu0 0.0
    %397 = vmatprep.subr.mxu0 0.0
    %398 = vmatpush1.msra.mxu0 0.0
    %399 = vmatprep.subr.mxu0 0.0
    %400 = vmatpush1.msra.mxu0 0.0
    %401 = vmatprep.subr.mxu0 0.0
    %402 = vmatpush1.msra.mxu0 0.0
    %403 = vmatprep.subr.mxu0 0.0
    %404 = vmatpush1.msra.mxu0 0.0
    %405 = vmatprep.subr.mxu0 0.0
    %406 = vmatpush1.msra.mxu0 0.0
    %407 = vmatprep.subr.mxu0 0.0
    %408 = vmatpush1.msra.mxu0 0.0
    %409 = vmatprep.subr.mxu0 0.0
    %410 = vmatpush1.msra.mxu0 0.0
    %411 = vmatprep.subr.mxu0 0.0
    %412 = vmatpush1.msra.mxu0 0.0
    %413 = vmatprep.mubr.f32.mxu0 0.0
    %414 = vmatmul.mubr.f32.gmra.mrb[0].mxu0 %v347
    %v415 = vpop.f32.mrb[0].mxu0
    %v416 = vadd.f32 0.0, %v415
    %v417 = vpop.f32.mrb[0].mxu0
    %418 = vdwg.mxu0
    %v420 = vrot.slane %v416, 6
    %v422 = vadd.f32 %v224, %v420
    %v423 = vxor.u32 %v422, 2147483648
    %v424 = vmul.f32 %v423, 1.442695
    %v425 = vpow.pop %v424
    %v426 = vadd.f32 %v425, 1.0
    %v427 = vrcp.pop %v426
    %v428 = vmul.f32 1.0, %v427
    %v429 = vtanh.pop %v422
    %v431 = vrot.slane %v330, 6
    %v433 = vmul.f32 %v428, %v431
    %435 = vrot.lane.b32.xlu0 %v429, 32
    %v436 = vpop.permute.xlu0 %435
    %v438 = vmul.f32 %v428, %v436
    %440 = vrot.lane.b32.xlu0 %v438, 32
    %v441 = vpop.permute.xlu0 %440
    %v443 = vadd.f32 %v433, %v441
    %v444 = vtanh.pop %v443
    %446 = vrot.lane.b32.xlu0 %v444, 32
    %v447 = vpop.permute.xlu0 %446
    %v449 = vmul.f32 %v428, %v447
    %v450 = vmul.f32 %v340, %v449
    %v452 = vrot.slane %v450, 2
    %v454 = vadd.f32 %v343, %v452
    %v456 = vrot.slane %v449, 2
    %457 = vrot.lane.b32.xlu0 %v456, 64
    %v458 = vpop.permute.xlu0 %457
    %v459 = vsel %vm238, %v458, 0
    %461 = vmatprep.subr.mxu0 0.0
    %462 = vmatpush1.msra.mxu0 %v234
    %463 = vmatprep.subr.mxu0 0.0
    %464 = vmatpush1.msra.mxu0 %v235
    %465 = vmatprep.subr.mxu0 0.0
    %466 = vmatpush1.msra.mxu0 %v236
    %467 = vmatprep.subr.mxu0 0.0
    %468 = vmatpush1.msra.mxu0 %v237
    %469 = vmatprep.subr.mxu0 0.0
    %470 = vmatpush1.msra.mxu0 0.0
    %471 = vmatprep.subr.mxu0 0.0
    %472 = vmatpush1.msra.mxu0 0.0
    %473 = vmatprep.subr.mxu0 0.0
    %474 = vmatpush1.msra.mxu0 0.0
    %475 = vmatprep.subr.mxu0 0.0
    %476 = vmatpush1.msra.mxu0 0.0
    %477 = vmatprep.subr.mxu0 0.0
    %478 = vmatpush1.msra.mxu0 0.0
    %479 = vmatprep.subr.mxu0 0.0
    %480 = vmatpush1.msra.mxu0 0.0
    %481 = vmatprep.subr.mxu0 0.0
    %482 = vmatpush1.msra.mxu0 0.0
    %483 = vmatprep.subr.mxu0 0.0
    %484 = vmatpush1.msra.mxu0 0.0
    %485 = vmatprep.subr.mxu0 0.0
    %486 = vmatpush1.msra.mxu0 0.0
    %487 = vmatprep.subr.mxu0 0.0
    %488 = vmatpush1.msra.mxu0 0.0
    %489 = vmatprep.subr.mxu0 0.0
    %490 = vmatpush1.msra.mxu0 0.0
    %491 = vmatprep.subr.mxu0 0.0
    %492 = vmatpush1.msra.mxu0 0.0
    %493 = vmatprep.subr.mxu0 0.0
    %494 = vmatpush1.msra.mxu0 0.0
    %495 = vmatprep.subr.mxu0 0.0
    %496 = vmatpush1.msra.mxu0 0.0
    %497 = vmatprep.subr.mxu0 0.0
    %498 = vmatpush1.msra.mxu0 0.0
    %499 = vmatprep.subr.mxu0 0.0
    %500 = vmatpush1.msra.mxu0 0.0
    %501 = vmatprep.subr.mxu0 0.0
    %502 = vmatpush1.msra.mxu0 0.0
    %503 = vmatprep.subr.mxu0 0.0
    %504 = vmatpush1.msra.mxu0 0.0
    %505 = vmatprep.subr.mxu0 0.0
    %506 = vmatpush1.msra.mxu0 0.0
    %507 = vmatprep.subr.mxu0 0.0
    %508 = vmatpush1.msra.mxu0 0.0
    %509 = vmatprep.subr.mxu0 0.0
    %510 = vmatpush1.msra.mxu0 0.0
    %511 = vmatprep.subr.mxu0 0.0
    %512 = vmatpush1.msra.mxu0 0.0
    %513 = vmatprep.subr.mxu0 0.0
    %514 = vmatpush1.msra.mxu0 0.0
    %515 = vmatprep.subr.mxu0 0.0
    %516 = vmatpush1.msra.mxu0 0.0
    %517 = vmatprep.subr.mxu0 0.0
    %518 = vmatpush1.msra.mxu0 0.0
    %519 = vmatprep.subr.mxu0 0.0
    %520 = vmatpush1.msra.mxu0 0.0
    %521 = vmatprep.subr.mxu0 0.0
    %522 = vmatpush1.msra.mxu0 0.0
    %523 = vmatprep.subr.mxu0 0.0
    %524 = vmatpush1.msra.mxu0 0.0
    %525 = vmatprep.mubr.f32.mxu0 0.0
    %526 = vmatmul.mubr.f32.gmra.mrb[0].mxu0 %v459
    %v527 = vpop.f32.mrb[0].mxu0
    %v528 = vadd.f32 0.0, %v527
    %v529 = vpop.f32.mrb[0].mxu0
    %530 = vdwg.mxu0
    %v532 = vrot.slane %v528, 4
    %v534 = vadd.f32 %v224, %v532
    %v535 = vxor.u32 %v534, 2147483648
    %v536 = vmul.f32 %v535, 1.442695
    %v537 = vpow.pop %v536
    %v538 = vadd.f32 %v537, 1.0
    %v539 = vrcp.pop %v538
    %v540 = vmul.f32 1.0, %v539
    %v541 = vtanh.pop %v534
    %v543 = vrot.slane %v443, 6
    %v545 = vmul.f32 %v540, %v543
    %547 = vrot.lane.b32.xlu0 %v541, 32
    %v548 = vpop.permute.xlu0 %547
    %v550 = vmul.f32 %v540, %v548
    %552 = vrot.lane.b32.xlu0 %v550, 32
    %v553 = vpop.permute.xlu0 %552
    %v555 = vadd.f32 %v545, %v553
    %v556 = vtanh.pop %v555
    %558 = vrot.lane.b32.xlu0 %v556, 32
    %v559 = vpop.permute.xlu0 %558
    %v561 = vmul.f32 %v540, %v559
    %v562 = vmul.f32 %v340, %v561
    %v564 = vrot.slane %v562, 4
    %v566 = vadd.f32 %v454, %v564
    %v568 = vrot.slane %v561, 4
    %569 = vrot.lane.b32.xlu0 %v568, 64
    %v570 = vpop.permute.xlu0 %569
    %v571 = vsel %vm238, %v570, 0
    %573 = vmatprep.subr.mxu0 0.0
    %574 = vmatpush1.msra.mxu0 %v234
    %575 = vmatprep.subr.mxu0 0.0
    %576 = vmatpush1.msra.mxu0 %v235
    %577 = vmatprep.subr.mxu0 0.0
    %578 = vmatpush1.msra.mxu0 %v236
    %579 = vmatprep.subr.mxu0 0.0
    %580 = vmatpush1.msra.mxu0 %v237
    %581 = vmatprep.subr.mxu0 0.0
    %582 = vmatpush1.msra.mxu0 0.0
    %583 = vmatprep.subr.mxu0 0.0
    %584 = vmatpush1.msra.mxu0 0.0
    %585 = vmatprep.subr.mxu0 0.0
    %586 = vmatpush1.msra.mxu0 0.0
    %587 = vmatprep.subr.mxu0 0.0
    %588 = vmatpush1.msra.mxu0 0.0
    %589 = vmatprep.subr.mxu0 0.0
    %590 = vmatpush1.msra.mxu0 0.0
    %591 = vmatprep.subr.mxu0 0.0
    %592 = vmatpush1.msra.mxu0 0.0
    %593 = vmatprep.subr.mxu0 0.0
    %594 = vmatpush1.msra.mxu0 0.0
    %595 = vmatprep.subr.mxu0 0.0
    %596 = vmatpush1.msra.mxu0 0.0
    %597 = vmatprep.subr.mxu0 0.0
    %598 = vmatpush1.msra.mxu0 0.0
    %599 = vmatprep.subr.mxu0 0.0
    %600 = vmatpush1.msra.mxu0 0.0
    %601 = vmatprep.subr.mxu0 0.0
    %602 = vmatpush1.msra.mxu0 0.0
    %603 = vmatprep.subr.mxu0 0.0
    %604 = vmatpush1.msra.mxu0 0.0
    %605 = vmatprep.subr.mxu0 0.0
    %606 = vmatpush1.msra.mxu0 0.0
    %607 = vmatprep.subr.mxu0 0.0
    %608 = vmatpush1.msra.mxu0 0.0
    %609 = vmatprep.subr.mxu0 0.0
    %610 = vmatpush1.msra.mxu0 0.0
    %611 = vmatprep.subr.mxu0 0.0
    %612 = vmatpush1.msra.mxu0 0.0
    %613 = vmatprep.subr.mxu0 0.0
    %614 = vmatpush1.msra.mxu0 0.0
    %615 = vmatprep.subr.mxu0 0.0
    %616 = vmatpush1.msra.mxu0 0.0
    %617 = vmatprep.subr.mxu0 0.0
    %618 = vmatpush1.msra.mxu0 0.0
    %619 = vmatprep.subr.mxu0 0.0
    %620 = vmatpush1.msra.mxu0 0.0
    %621 = vmatprep.subr.mxu0 0.0
    %622 = vmatpush1.msra.mxu0 0.0
    %623 = vmatprep.subr.mxu0 0.0
    %624 = vmatpush1.msra.mxu0 0.0
    %625 = vmatprep.subr.mxu0 0.0
    %626 = vmatpush1.msra.mxu0 0.0
    %627 = vmatprep.subr.mxu0 0.0
    %628 = vmatpush1.msra.mxu0 0.0
    %629 = vmatprep.subr.mxu0 0.0
    %630 = vmatpush1.msra.mxu0 0.0
    %631 = vmatprep.subr.mxu0 0.0
    %632 = vmatpush1.msra.mxu0 0.0
    %633 = vmatprep.subr.mxu0 0.0
    %634 = vmatpush1.msra.mxu0 0.0
    %635 = vmatprep.subr.mxu0 0.0
    %636 = vmatpush1.msra.mxu0 0.0
    %637 = vmatprep.mubr.f32.mxu0 0.0
    %638 = vmatmul.mubr.f32.gmra.mrb[0].mxu0 %v571
    %v639 = vpop.f32.mrb[0].mxu0
    %v640 = vadd.f32 0.0, %v639
    %v641 = vpop.f32.mrb[0].mxu0
    %642 = vdwg.mxu0
    %v644 = vrot.slane %v640, 2
    %v646 = vadd.f32 %v224, %v644
    %v647 = vxor.u32 %v646, 2147483648
    %v648 = vmul.f32 %v647, 1.442695
    %v649 = vpow.pop %v648
    %v650 = vadd.f32 %v649, 1.0
    %v651 = vrcp.pop %v650
    %v652 = vmul.f32 1.0, %v651
    %v653 = vtanh.pop %v646
    %v655 = vrot.slane %v555, 6
    %v657 = vmul.f32 %v652, %v655
    %659 = vrot.lane.b32.xlu0 %v653, 32
    %v660 = vpop.permute.xlu0 %659
    %v662 = vmul.f32 %v652, %v660
    %664 = vrot.lane.b32.xlu0 %v662, 32
    %v665 = vpop.permute.xlu0 %664
    %v667 = vadd.f32 %v657, %v665
    %v668 = vtanh.pop %v667
    %670 = vrot.lane.b32.xlu0 %v668, 32
    %v671 = vpop.permute.xlu0 %670
    %v673 = vmul.f32 %v652, %v671
    %v674 = vmul.f32 %v340, %v673
    %v676 = vrot.slane %v674, 6
    %v678 = vadd.f32 %v566, %v676
    %v680 = vrot.slane %v673, 6
    %681 = vrot.lane.b32.xlu0 %v680, 64
    %v682 = vpop.permute.xlu0 %681
    %v683 = vsel %vm238, %v682, 0
    %685 = vmatprep.subr.mxu0 0.0
    %686 = vmatpush1.msra.mxu0 %v234
    %687 = vmatprep.subr.mxu0 0.0
    %688 = vmatpush1.msra.mxu0 %v235
    %689 = vmatprep.subr.mxu0 0.0
    %690 = vmatpush1.msra.mxu0 %v236
    %691 = vmatprep.subr.mxu0 0.0
    %692 = vmatpush1.msra.mxu0 %v237
    %693 = vmatprep.subr.mxu0 0.0
    %694 = vmatpush1.msra.mxu0 0.0
    %695 = vmatprep.subr.mxu0 0.0
    %696 = vmatpush1.msra.mxu0 0.0
    %697 = vmatprep.subr.mxu0 0.0
    %698 = vmatpush1.msra.mxu0 0.0
    %699 = vmatprep.subr.mxu0 0.0
    %700 = vmatpush1.msra.mxu0 0.0
    %701 = vmatprep.subr.mxu0 0.0
    %702 = vmatpush1.msra.mxu0 0.0
    %703 = vmatprep.subr.mxu0 0.0
    %704 = vmatpush1.msra.mxu0 0.0
    %705 = vmatprep.subr.mxu0 0.0
    %706 = vmatpush1.msra.mxu0 0.0
    %707 = vmatprep.subr.mxu0 0.0
    %708 = vmatpush1.msra.mxu0 0.0
    %709 = vmatprep.subr.mxu0 0.0
    %710 = vmatpush1.msra.mxu0 0.0
    %711 = vmatprep.subr.mxu0 0.0
    %712 = vmatpush1.msra.mxu0 0.0
    %713 = vmatprep.subr.mxu0 0.0
    %714 = vmatpush1.msra.mxu0 0.0
    %715 = vmatprep.subr.mxu0 0.0
    %716 = vmatpush1.msra.mxu0 0.0
    %717 = vmatprep.subr.mxu0 0.0
    %718 = vmatpush1.msra.mxu0 0.0
    %719 = vmatprep.subr.mxu0 0.0
    %720 = vmatpush1.msra.mxu0 0.0
    %721 = vmatprep.subr.mxu0 0.0
    %722 = vmatpush1.msra.mxu0 0.0
    %723 = vmatprep.subr.mxu0 0.0
    %724 = vmatpush1.msra.mxu0 0.0
    %725 = vmatprep.subr.mxu0 0.0
    %726 = vmatpush1.msra.mxu0 0.0
    %727 = vmatprep.subr.mxu0 0.0
    %728 = vmatpush1.msra.mxu0 0.0
    %729 = vmatprep.subr.mxu0 0.0
    %730 = vmatpush1.msra.mxu0 0.0
    %731 = vmatprep.subr.mxu0 0.0
    %732 = vmatpush1.msra.mxu0 0.0
    %733 = vmatprep.subr.mxu0 0.0
    %734 = vmatpush1.msra.mxu0 0.0
    %735 = vmatprep.subr.mxu0 0.0
    %736 = vmatpush1.msra.mxu0 0.0
    %737 = vmatprep.subr.mxu0 0.0
    %738 = vmatpush1.msra.mxu0 0.0
    %739 = vmatprep.subr.mxu0 0.0
    %740 = vmatpush1.msra.mxu0 0.0
    %741 = vmatprep.subr.mxu0 0.0
    %742 = vmatpush1.msra.mxu0 0.0
    %743 = vmatprep.subr.mxu0 0.0
    %744 = vmatpush1.msra.mxu0 0.0
    %745 = vmatprep.subr.mxu0 0.0
    %746 = vmatpush1.msra.mxu0 0.0
    %747 = vmatprep.subr.mxu0 0.0
    %748 = vmatpush1.msra.mxu0 0.0
    %749 = vmatprep.mubr.f32.mxu0 0.0
    %750 = vmatmul.mubr.f32.gmra.mrb[0].mxu0 %v683
    %v751 = vpop.f32.mrb[0].mxu0
    %v752 = vadd.f32 0.0, %v751
    %v753 = vpop.f32.mrb[0].mxu0
    %754 = vdwg.mxu0
    %v755 = vadd.f32 %v229, %v752
    %v756 = vxor.u32 %v755, 2147483648
    %v757 = vmul.f32 %v756, 1.442695
    %v758 = vpow.pop %v757
    %v759 = vadd.f32 %v758, 1.0
    %v760 = vrcp.pop %v759
    %v761 = vmul.f32 1.0, %v760
    %v762 = vtanh.pop %v755
    %v764 = vrot.slane %v667, 6
    %v766 = vmul.f32 %v761, %v764
    %768 = vrot.lane.b32.xlu0 %v762, 32
    %v769 = vpop.permute.xlu0 %768
    %v771 = vmul.f32 %v761, %v769
    %773 = vrot.lane.b32.xlu0 %v771, 32
    %v774 = vpop.permute.xlu0 %773
    %v776 = vadd.f32 %v766, %v774
    %v777 = vtanh.pop %v776
    %779 = vrot.lane.b32.xlu0 %v777, 32
    %v780 = vpop.permute.xlu0 %779
    %v782 = vmul.f32 %v761, %v780
    %784 = vset.pattern.permute.xlu0 0
    %785 = vperm.xlu0 %784, %v233
    %v786 = vpop.permute.xlu0 %785
    %v788 = vmul.f32 %v786, %v782
    %v789 = vadd.f32 %v678, %v788
    %791 = vrot.lane.b32.xlu0 %v782, 64
    %v792 = vpop.permute.xlu0 %791
    %v793 = vsel %vm238, %v792, 0
    %795 = vmatprep.subr.mxu0 0.0
    %796 = vmatpush1.msra.mxu0 %v234
    %797 = vmatprep.subr.mxu0 0.0
    %798 = vmatpush1.msra.mxu0 %v235
    %799 = vmatprep.subr.mxu0 0.0
    %800 = vmatpush1.msra.mxu0 %v236
    %801 = vmatprep.subr.mxu0 0.0
    %802 = vmatpush1.msra.mxu0 %v237
    %803 = vmatprep.subr.mxu0 0.0
    %804 = vmatpush1.msra.mxu0 0.0
    %805 = vmatprep.subr.mxu0 0.0
    %806 = vmatpush1.msra.mxu0 0.0
    %807 = vmatprep.subr.mxu0 0.0
    %808 = vmatpush1.msra.mxu0 0.0
    %809 = vmatprep.subr.mxu0 0.0
    %810 = vmatpush1.msra.mxu0 0.0
    %811 = vmatprep.subr.mxu0 0.0
    %812 = vmatpush1.msra.mxu0 0.0
    %813 = vmatprep.subr.mxu0 0.0
    %814 = vmatpush1.msra.mxu0 0.0
    %815 = vmatprep.subr.mxu0 0.0
    %816 = vmatpush1.msra.mxu0 0.0
    %817 = vmatprep.subr.mxu0 0.0
    %818 = vmatpush1.msra.mxu0 0.0
    %819 = vmatprep.subr.mxu0 0.0
    %820 = vmatpush1.msra.mxu0 0.0
    %821 = vmatprep.subr.mxu0 0.0
    %822 = vmatpush1.msra.mxu0 0.0
    %823 = vmatprep.subr.mxu0 0.0
    %824 = vmatpush1.msra.mxu0 0.0
    %825 = vmatprep.subr.mxu0 0.0
    %826 = vmatpush1.msra.mxu0 0.0
    %827 = vmatprep.subr.mxu0 0.0
    %828 = vmatpush1.msra.mxu0 0.0
    %829 = vmatprep.subr.mxu0 0.0
    %830 = vmatpush1.msra.mxu0 0.0
    %831 = vmatprep.subr.mxu0 0.0
    %832 = vmatpush1.msra.mxu0 0.0
    %833 = vmatprep.subr.mxu0 0.0
    %834 = vmatpush1.msra.mxu0 0.0
    %835 = vmatprep.subr.mxu0 0.0
    %836 = vmatpush1.msra.mxu0 0.0
    %837 = vmatprep.subr.mxu0 0.0
    %838 = vmatpush1.msra.mxu0 0.0
    %839 = vmatprep.subr.mxu0 0.0
    %840 = vmatpush1.msra.mxu0 0.0
    %841 = vmatprep.subr.mxu0 0.0
    %842 = vmatpush1.msra.mxu0 0.0
    %843 = vmatprep.subr.mxu0 0.0
    %844 = vmatpush1.msra.mxu0 0.0
    %845 = vmatprep.subr.mxu0 0.0
    %846 = vmatpush1.msra.mxu0 0.0
    %847 = vmatprep.subr.mxu0 0.0
    %848 = vmatpush1.msra.mxu0 0.0
    %849 = vmatprep.subr.mxu0 0.0
    %850 = vmatpush1.msra.mxu0 0.0
    %851 = vmatprep.subr.mxu0 0.0
    %852 = vmatpush1.msra.mxu0 0.0
    %853 = vmatprep.subr.mxu0 0.0
    %854 = vmatpush1.msra.mxu0 0.0
    %855 = vmatprep.subr.mxu0 0.0
    %856 = vmatpush1.msra.mxu0 0.0
    %857 = vmatprep.subr.mxu0 0.0
    %858 = vmatpush1.msra.mxu0 0.0
    %859 = vmatprep.mubr.f32.mxu0 0.0
    %860 = vmatmul.mubr.f32.gmra.mrb[0].mxu0 %v793
    %v861 = vpop.f32.mrb[0].mxu0
    %v862 = vadd.f32 0.0, %v861
    %v863 = vpop.f32.mrb[0].mxu0
    %864 = vdwg.mxu0
    %v866 = vrot.slane %v862, 6
    %v868 = vadd.f32 %v229, %v866
    %v869 = vxor.u32 %v868, 2147483648
    %v870 = vmul.f32 %v869, 1.442695
    %v871 = vpow.pop %v870
    %v872 = vadd.f32 %v871, 1.0
    %v873 = vrcp.pop %v872
    %v874 = vmul.f32 1.0, %v873
    %v875 = vtanh.pop %v868
    %v877 = vrot.slane %v776, 6
    %v879 = vmul.f32 %v874, %v877
    %881 = vrot.lane.b32.xlu0 %v875, 32
    %v882 = vpop.permute.xlu0 %881
    %v884 = vmul.f32 %v874, %v882
    %886 = vrot.lane.b32.xlu0 %v884, 32
    %v887 = vpop.permute.xlu0 %886
    %v889 = vadd.f32 %v879, %v887
    %v890 = vtanh.pop %v889
    %892 = vrot.lane.b32.xlu0 %v890, 32
    %v893 = vpop.permute.xlu0 %892
    %v895 = vmul.f32 %v874, %v893
    %v896 = vmul.f32 %v786, %v895
    %v898 = vrot.slane %v896, 2
    %v900 = vadd.f32 %v789, %v898
    %v902 = vrot.slane %v895, 2
    %903 = vrot.lane.b32.xlu0 %v902, 64
    %v904 = vpop.permute.xlu0 %903
    %v905 = vsel %vm238, %v904, 0
    %907 = vmatprep.subr.mxu0 0.0
    %908 = vmatpush1.msra.mxu0 %v234
    %909 = vmatprep.subr.mxu0 0.0
    %910 = vmatpush1.msra.mxu0 %v235
    %911 = vmatprep.subr.mxu0 0.0
    %912 = vmatpush1.msra.mxu0 %v236
    %913 = vmatprep.subr.mxu0 0.0
    %914 = vmatpush1.msra.mxu0 %v237
    %915 = vmatprep.subr.mxu0 0.0
    %916 = vmatpush1.msra.mxu0 0.0
    %917 = vmatprep.subr.mxu0 0.0
    %918 = vmatpush1.msra.mxu0 0.0
    %919 = vmatprep.subr.mxu0 0.0
    %920 = vmatpush1.msra.mxu0 0.0
    %921 = vmatprep.subr.mxu0 0.0
    %922 = vmatpush1.msra.mxu0 0.0
    %923 = vmatprep.subr.mxu0 0.0
    %924 = vmatpush1.msra.mxu0 0.0
    %925 = vmatprep.subr.mxu0 0.0
    %926 = vmatpush1.msra.mxu0 0.0
    %927 = vmatprep.subr.mxu0 0.0
    %928 = vmatpush1.msra.mxu0 0.0
    %929 = vmatprep.subr.mxu0 0.0
    %930 = vmatpush1.msra.mxu0 0.0
    %931 = vmatprep.subr.mxu0 0.0
    %932 = vmatpush1.msra.mxu0 0.0
    %933 = vmatprep.subr.mxu0 0.0
    %934 = vmatpush1.msra.mxu0 0.0
    %935 = vmatprep.subr.mxu0 0.0
    %936 = vmatpush1.msra.mxu0 0.0
    %937 = vmatprep.subr.mxu0 0.0
    %938 = vmatpush1.msra.mxu0 0.0
    %939 = vmatprep.subr.mxu0 0.0
    %940 = vmatpush1.msra.mxu0 0.0
    %941 = vmatprep.subr.mxu0 0.0
    %942 = vmatpush1.msra.mxu0 0.0
    %943 = vmatprep.subr.mxu0 0.0
    %944 = vmatpush1.msra.mxu0 0.0
    %945 = vmatprep.subr.mxu0 0.0
    %946 = vmatpush1.msra.mxu0 0.0
    %947 = vmatprep.subr.mxu0 0.0
    %948 = vmatpush1.msra.mxu0 0.0
    %949 = vmatprep.subr.mxu0 0.0
    %950 = vmatpush1.msra.mxu0 0.0
    %951 = vmatprep.subr.mxu0 0.0
    %952 = vmatpush1.msra.mxu0 0.0
    %953 = vmatprep.subr.mxu0 0.0
    %954 = vmatpush1.msra.mxu0 0.0
    %955 = vmatprep.subr.mxu0 0.0
    %956 = vmatpush1.msra.mxu0 0.0
    %957 = vmatprep.subr.mxu0 0.0
    %958 = vmatpush1.msra.mxu0 0.0
    %959 = vmatprep.subr.mxu0 0.0
    %960 = vmatpush1.msra.mxu0 0.0
    %961 = vmatprep.subr.mxu0 0.0
    %962 = vmatpush1.msra.mxu0 0.0
    %963 = vmatprep.subr.mxu0 0.0
    %964 = vmatpush1.msra.mxu0 0.0
    %965 = vmatprep.subr.mxu0 0.0
    %966 = vmatpush1.msra.mxu0 0.0
    %967 = vmatprep.subr.mxu0 0.0
    %968 = vmatpush1.msra.mxu0 0.0
    %969 = vmatprep.subr.mxu0 0.0
    %970 = vmatpush1.msra.mxu0 0.0
    %971 = vmatprep.mubr.f32.mxu0 0.0
    %972 = vmatmul.mubr.f32.gmra.mrb[0].mxu0 %v905
    %v973 = vpop.f32.mrb[0].mxu0
    %v974 = vadd.f32 0.0, %v973
    %v975 = vpop.f32.mrb[0].mxu0
    %976 = vdwg.mxu0
    %v978 = vrot.slane %v974, 4
    %v980 = vadd.f32 %v229, %v978
    %v981 = vxor.u32 %v980, 2147483648
    %v982 = vmul.f32 %v981, 1.442695
    %v983 = vpow.pop %v982
    %v984 = vadd.f32 %v983, 1.0
    %v985 = vrcp.pop %v984
    %v986 = vmul.f32 1.0, %v985
    %v987 = vtanh.pop %v980
    %v989 = vrot.slane %v889, 6
    %v991 = vmul.f32 %v986, %v989
    %993 = vrot.lane.b32.xlu0 %v987, 32
    %v994 = vpop.permute.xlu0 %993
    %v996 = vmul.f32 %v986, %v994
    %998 = vrot.lane.b32.xlu0 %v996, 32
    %v999 = vpop.permute.xlu0 %998
    %v1001 = vadd.f32 %v991, %v999
    %v1002 = vtanh.pop %v1001
    %1004 = vrot.lane.b32.xlu0 %v1002, 32
    %v1005 = vpop.permute.xlu0 %1004
    %v1007 = vmul.f32 %v986, %v1005
    %v1008 = vmul.f32 %v786, %v1007
    %v1010 = vrot.slane %v1008, 4
    %v1012 = vadd.f32 %v900, %v1010
    %v1014 = vrot.slane %v1007, 4
    %1015 = vrot.lane.b32.xlu0 %v1014, 64
    %v1016 = vpop.permute.xlu0 %1015
    %v1017 = vsel %vm238, %v1016, 0
    %1019 = vmatprep.subr.mxu0 0.0
    %1020 = vmatpush1.msra.mxu0 %v234
    %1021 = vmatprep.subr.mxu0 0.0
    %1022 = vmatpush1.msra.mxu0 %v235
    %1023 = vmatprep.subr.mxu0 0.0
    %1024 = vmatpush1.msra.mxu0 %v236
    %1025 = vmatprep.subr.mxu0 0.0
    %1026 = vmatpush1.msra.mxu0 %v237
    %1027 = vmatprep.subr.mxu0 0.0
    %1028 = vmatpush1.msra.mxu0 0.0
    %1029 = vmatprep.subr.mxu0 0.0
    %1030 = vmatpush1.msra.mxu0 0.0
    %1031 = vmatprep.subr.mxu0 0.0
    %1032 = vmatpush1.msra.mxu0 0.0
    %1033 = vmatprep.subr.mxu0 0.0
    %1034 = vmatpush1.msra.mxu0 0.0
    %1035 = vmatprep.subr.mxu0 0.0
    %1036 = vmatpush1.msra.mxu0 0.0
    %1037 = vmatprep.subr.mxu0 0.0
    %1038 = vmatpush1.msra.mxu0 0.0
    %1039 = vmatprep.subr.mxu0 0.0
    %1040 = vmatpush1.msra.mxu0 0.0
    %1041 = vmatprep.subr.mxu0 0.0
    %1042 = vmatpush1.msra.mxu0 0.0
    %1043 = vmatprep.subr.mxu0 0.0
    %1044 = vmatpush1.msra.mxu0 0.0
    %1045 = vmatprep.subr.mxu0 0.0
    %1046 = vmatpush1.msra.mxu0 0.0
    %1047 = vmatprep.subr.mxu0 0.0
    %1048 = vmatpush1.msra.mxu0 0.0
    %1049 = vmatprep.subr.mxu0 0.0
    %1050 = vmatpush1.msra.mxu0 0.0
    %1051 = vmatprep.subr.mxu0 0.0
    %1052 = vmatpush1.msra.mxu0 0.0
    %1053 = vmatprep.subr.mxu0 0.0
    %1054 = vmatpush1.msra.mxu0 0.0
    %1055 = vmatprep.subr.mxu0 0.0
    %1056 = vmatpush1.msra.mxu0 0.0
    %1057 = vmatprep.subr.mxu0 0.0
    %1058 = vmatpush1.msra.mxu0 0.0
    %1059 = vmatprep.subr.mxu0 0.0
    %1060 = vmatpush1.msra.mxu0 0.0
    %1061 = vmatprep.subr.mxu0 0.0
    %1062 = vmatpush1.msra.mxu0 0.0
    %1063 = vmatprep.subr.mxu0 0.0
    %1064 = vmatpush1.msra.mxu0 0.0
    %1065 = vmatprep.subr.mxu0 0.0
    %1066 = vmatpush1.msra.mxu0 0.0
    %1067 = vmatprep.subr.mxu0 0.0
    %1068 = vmatpush1.msra.mxu0 0.0
    %1069 = vmatprep.subr.mxu0 0.0
    %1070 = vmatpush1.msra.mxu0 0.0
    %1071 = vmatprep.subr.mxu0 0.0
    %1072 = vmatpush1.msra.mxu0 0.0
    %1073 = vmatprep.subr.mxu0 0.0
    %1074 = vmatpush1.msra.mxu0 0.0
    %1075 = vmatprep.subr.mxu0 0.0
    %1076 = vmatpush1.msra.mxu0 0.0
    %1077 = vmatprep.subr.mxu0 0.0
    %1078 = vmatpush1.msra.mxu0 0.0
    %1079 = vmatprep.subr.mxu0 0.0
    %1080 = vmatpush1.msra.mxu0 0.0
    %1081 = vmatprep.subr.mxu0 0.0
    %1082 = vmatpush1.msra.mxu0 0.0
    %1083 = vmatprep.mubr.f32.mxu0 0.0
    %1084 = vmatmul.mubr.f32.gmra.mrb[0].mxu0 %v1017
    %v1085 = vpop.f32.mrb[0].mxu0
    %v1086 = vadd.f32 0.0, %v1085
    %v1087 = vpop.f32.mrb[0].mxu0
    %1088 = vdwg.mxu0
    %v1090 = vrot.slane %v1086, 2
    %v1092 = vadd.f32 %v229, %v1090
    %v1093 = vxor.u32 %v1092, 2147483648
    %v1094 = vmul.f32 %v1093, 1.442695
    %v1095 = vpow.pop %v1094
    %v1096 = vadd.f32 %v1095, 1.0
    %v1097 = vrcp.pop %v1096
    %v1098 = vmul.f32 1.0, %v1097
    %v1099 = vtanh.pop %v1092
    %v1101 = vrot.slane %v1001, 6
    %v1103 = vmul.f32 %v1098, %v1101
    %1105 = vrot.lane.b32.xlu0 %v1099, 32
    %v1106 = vpop.permute.xlu0 %1105
    %v1108 = vmul.f32 %v1098, %v1106
    %1110 = vrot.lane.b32.xlu0 %v1108, 32
    %v1111 = vpop.permute.xlu0 %1110
    %v1113 = vadd.f32 %v1103, %v1111
    %v1114 = vtanh.pop %v1113
    %1116 = vrot.lane.b32.xlu0 %v1114, 32
    %v1117 = vpop.permute.xlu0 %1116
    %v1119 = vmul.f32 %v1098, %v1117
    %v1120 = vmul.f32 %v786, %v1119
    %v1122 = vrot.slane %v1120, 6
    %v1124 = vadd.f32 %v1012, %v1122
    %v1125 = vld [vmem:[%s7] sm:$0xff]
    %v1126 = vld [vmem:[%s7 + $0x8] sm:$0xff]
    %v1127 = vld [vmem:[%s7 + $0x10] sm:$0xff]
    %v1128 = vld [vmem:[%s7 + $0x18] sm:$0xff]
    %v1129 = vld [vmem:[%s8] sm:$0x1]
    %v1131 = vlaneseq
    %v1132 = vshrl.u32 %v1131, 7
    %v1133 = vsub.s32 0, %v1132
    %v1134 = vrot.slane %v1129, %v1133
    %1137 = vrot.lane.b32.xlu0 %v1124, 64
    %v1138 = vpop.permute.xlu0 %1137
    %v1139 = vsel %vm238, %v1138, 0
    %1141 = vmatprep.subr.mxu0 0.0
    %1142 = vmatpush1.msra.mxu0 %v1125
    %1143 = vmatprep.subr.mxu0 0.0
    %1144 = vmatpush1.msra.mxu0 %v1126
    %1145 = vmatprep.subr.mxu0 0.0
    %1146 = vmatpush1.msra.mxu0 %v1127
    %1147 = vmatprep.subr.mxu0 0.0
    %1148 = vmatpush1.msra.mxu0 %v1128
    %1149 = vmatprep.subr.mxu0 0.0
    %1150 = vmatpush1.msra.mxu0 0.0
    %1151 = vmatprep.subr.mxu0 0.0
    %1152 = vmatpush1.msra.mxu0 0.0
    %1153 = vmatprep.subr.mxu0 0.0
    %1154 = vmatpush1.msra.mxu0 0.0
    %1155 = vmatprep.subr.mxu0 0.0
    %1156 = vmatpush1.msra.mxu0 0.0
    %1157 = vmatprep.subr.mxu0 0.0
    %1158 = vmatpush1.msra.mxu0 0.0
    %1159 = vmatprep.subr.mxu0 0.0
    %1160 = vmatpush1.msra.mxu0 0.0
    %1161 = vmatprep.subr.mxu0 0.0
    %1162 = vmatpush1.msra.mxu0 0.0
    %1163 = vmatprep.subr.mxu0 0.0
    %1164 = vmatpush1.msra.mxu0 0.0
    %1165 = vmatprep.subr.mxu0 0.0
    %1166 = vmatpush1.msra.mxu0 0.0
    %1167 = vmatprep.subr.mxu0 0.0
    %1168 = vmatpush1.msra.mxu0 0.0
    %1169 = vmatprep.subr.mxu0 0.0
    %1170 = vmatpush1.msra.mxu0 0.0
    %1171 = vmatprep.subr.mxu0 0.0
    %1172 = vmatpush1.msra.mxu0 0.0
    %1173 = vmatprep.subr.mxu0 0.0
    %1174 = vmatpush1.msra.mxu0 0.0
    %1175 = vmatprep.subr.mxu0 0.0
    %1176 = vmatpush1.msra.mxu0 0.0
    %1177 = vmatprep.subr.mxu0 0.0
    %1178 = vmatpush1.msra.mxu0 0.0
    %1179 = vmatprep.subr.mxu0 0.0
    %1180 = vmatpush1.msra.mxu0 0.0
    %1181 = vmatprep.subr.mxu0 0.0
    %1182 = vmatpush1.msra.mxu0 0.0
    %1183 = vmatprep.subr.mxu0 0.0
    %1184 = vmatpush1.msra.mxu0 0.0
    %1185 = vmatprep.subr.mxu0 0.0
    %1186 = vmatpush1.msra.mxu0 0.0
    %1187 = vmatprep.subr.mxu0 0.0
    %1188 = vmatpush1.msra.mxu0 0.0
    %1189 = vmatprep.subr.mxu0 0.0
    %1190 = vmatpush1.msra.mxu0 0.0
    %1191 = vmatprep.subr.mxu0 0.0
    %1192 = vmatpush1.msra.mxu0 0.0
    %1193 = vmatprep.subr.mxu0 0.0
    %1194 = vmatpush1.msra.mxu0 0.0
    %1195 = vmatprep.subr.mxu0 0.0
    %1196 = vmatpush1.msra.mxu0 0.0
    %1197 = vmatprep.subr.mxu0 0.0
    %1198 = vmatpush1.msra.mxu0 0.0
    %1199 = vmatprep.subr.mxu0 0.0
    %1200 = vmatpush1.msra.mxu0 0.0
    %1201 = vmatprep.subr.mxu0 0.0
    %1202 = vmatpush1.msra.mxu0 0.0
    %1203 = vmatprep.subr.mxu0 0.0
    %1204 = vmatpush1.msra.mxu0 0.0
    %1205 = vmatprep.mubr.f32.mxu0 0.0
    %1206 = vmatmul.mubr.f32.gmra.mrb[0].mxu0 %v1139
    %v1207 = vpop.f32.mrb[0].mxu0
    %v1208 = vadd.f32 %v1134, %v1207
    %v1209 = vpop.f32.mrb[0].mxu0
    %1210 = vdwg.mxu0
    %v1211 = vmax.f32 %v1208, 0.0
    %v1212 = vld [vmem:[%s9] sm:$0xff]
    %v1213 = vld [vmem:[%s9 + $0x8] sm:$0xff]
    %v1214 = vld [vmem:[%s9 + $0x10] sm:$0xff]
    %v1215 = vld [vmem:[%s9 + $0x18] sm:$0xff]
    %v1216 = vld [vmem:[%s9 + $0x20] sm:$0xff]
    %v1217 = vld [vmem:[%s9 + $0x28] sm:$0xff]
    %v1218 = vld [vmem:[%s9 + $0x30] sm:$0xff]
    %v1219 = vld [vmem:[%s9 + $0x38] sm:$0xff]
    %v1220 = vld [vmem:[%s10] sm:$0x1]
    %v1222 = vlaneseq
    %v1223 = vshrl.u32 %v1222, 7
    %v1224 = vsub.s32 0, %v1223
    %v1225 = vrot.slane %v1220, %v1224
    %v1228 = vsel %vm150, %v1211, 0
    %1230 = vmatprep.subr.mxu0 0.0
    %1231 = vmatpush1.msra.mxu0 %v1212
    %1232 = vmatprep.subr.mxu0 0.0
    %1233 = vmatpush1.msra.mxu0 %v1213
    %1234 = vmatprep.subr.mxu0 0.0
    %1235 = vmatpush1.msra.mxu0 %v1214
    %1236 = vmatprep.subr.mxu0 0.0
    %1237 = vmatpush1.msra.mxu0 %v1215
    %1238 = vmatprep.subr.mxu0 0.0
    %1239 = vmatpush1.msra.mxu0 %v1216
    %1240 = vmatprep.subr.mxu0 0.0
    %1241 = vmatpush1.msra.mxu0 %v1217
    %1242 = vmatprep.subr.mxu0 0.0
    %1243 = vmatpush1.msra.mxu0 %v1218
    %1244 = vmatprep.subr.mxu0 0.0
    %1245 = vmatpush1.msra.mxu0 %v1219
    %1246 = vmatprep.subr.mxu0 0.0
    %1247 = vmatpush1.msra.mxu0 0.0
    %1248 = vmatprep.subr.mxu0 0.0
    %1249 = vmatpush1.msra.mxu0 0.0
    %1250 = vmatprep.subr.mxu0 0.0
    %1251 = vmatpush1.msra.mxu0 0.0
    %1252 = vmatprep.subr.mxu0 0.0
    %1253 = vmatpush1.msra.mxu0 0.0
    %1254 = vmatprep.subr.mxu0 0.0
    %1255 = vmatpush1.msra.mxu0 0.0
    %1256 = vmatprep.subr.mxu0 0.0
    %1257 = vmatpush1.msra.mxu0 0.0
    %1258 = vmatprep.subr.mxu0 0.0
    %1259 = vmatpush1.msra.mxu0 0.0
    %1260 = vmatprep.subr.mxu0 0.0
    %1261 = vmatpush1.msra.mxu0 0.0
    %1262 = vmatprep.subr.mxu0 0.0
    %1263 = vmatpush1.msra.mxu0 0.0
    %1264 = vmatprep.subr.mxu0 0.0
    %1265 = vmatpush1.msra.mxu0 0.0
    %1266 = vmatprep.subr.mxu0 0.0
    %1267 = vmatpush1.msra.mxu0 0.0
    %1268 = vmatprep.subr.mxu0 0.0
    %1269 = vmatpush1.msra.mxu0 0.0
    %1270 = vmatprep.subr.mxu0 0.0
    %1271 = vmatpush1.msra.mxu0 0.0
    %1272 = vmatprep.subr.mxu0 0.0
    %1273 = vmatpush1.msra.mxu0 0.0
    %1274 = vmatprep.subr.mxu0 0.0
    %1275 = vmatpush1.msra.mxu0 0.0
    %1276 = vmatprep.subr.mxu0 0.0
    %1277 = vmatpush1.msra.mxu0 0.0
    %1278 = vmatprep.subr.mxu0 0.0
    %1279 = vmatpush1.msra.mxu0 0.0
    %1280 = vmatprep.subr.mxu0 0.0
    %1281 = vmatpush1.msra.mxu0 0.0
    %1282 = vmatprep.subr.mxu0 0.0
    %1283 = vmatpush1.msra.mxu0 0.0
    %1284 = vmatprep.subr.mxu0 0.0
    %1285 = vmatpush1.msra.mxu0 0.0
    %1286 = vmatprep.subr.mxu0 0.0
    %1287 = vmatpush1.msra.mxu0 0.0
    %1288 = vmatprep.subr.mxu0 0.0
    %1289 = vmatpush1.msra.mxu0 0.0
    %1290 = vmatprep.subr.mxu0 0.0
    %1291 = vmatpush1.msra.mxu0 0.0
    %1292 = vmatprep.subr.mxu0 0.0
    %1293 = vmatpush1.msra.mxu0 0.0
    %1294 = vmatprep.mubr.f32.mxu0 0.0
    %1295 = vmatmul.mubr.f32.gmra.mrb[0].mxu0 %v1228
    %v1296 = vpop.f32.mrb[0].mxu0
    %v1297 = vadd.f32 %v1225, %v1296
    %v1298 = vpop.f32.mrb[0].mxu0
    %1299 = vdwg.mxu0
    %1300 = vst [vmem:[#allocation2] sm:$0x3] %v1297
    // Predicated region
    $region46: #{dqn_lstm_forward.1} parent=1 // pred_check
      _
    $region47: #{dqn_lstm_forward.1} parent=1 // pred_check_branch
      %1302 = sbr.rel (0) target = $region49
    $region48: #{dqn_lstm_forward.1} parent=1 // pred_region
      %s1304 = ssub.s32 32, 32
      %1305 = vsyncadd [#allocation3], %s1304
      %s1307 = sshll.u32 [#allocation2], 4
      %s1308 = int_to_ptr.vmem [resolvable:$true] %s1307
      %1310 = dma.vmem_to_hbm [thread:$0]  %s1308, 32, %s11, [#allocation3]
    $region49: #{dqn_lstm_forward.1} parent=1 // pred_fallthru
      _
    // Predicated region
    $region50: #{dqn_lstm_forward.1} parent=1 // pred_check
      _
    $region51: #{dqn_lstm_forward.1} parent=1 // pred_check_branch
      %1312 = sbr.rel (0) target = $region53
    $region52: #{dqn_lstm_forward.1} parent=1 // pred_region
      %1313 = dma.done [#allocation3], 32
    $region53: #{dqn_lstm_forward.1} parent=1 // pred_fallthru
      _
    %1314 = vsyncpa [#allocation3], 1

</llo_original>
